<compile_context>
chip_gen: v6e
topology: v6e:2x2x1
jax: 0.10.0
libtpu: 0.0.40
codegen_flags: <defaults>
</compile_context>

<pallas_src>
import functools

import numpy as np
import jax
import jax.numpy as jnp
from jax import lax
from jax.experimental import pallas as pl
from jax.experimental.pallas import tpu as pltpu

_MASK_FILL = -1e30  # finite "minus infinity": no NaN for fully-masked rows


# --------------------------------------------------------------------------- #
# Kernels
# --------------------------------------------------------------------------- #
def _make_full_kernel(inv_temp, has_mask, has_weight, emit_attn):
    """Full-Lk path: one grid step computes softmax over the whole row."""

    def kernel(*refs):
        it = iter(refs)
        q_ref = next(it)
        k_ref = next(it)
        v_ref = next(it)
        mask_ref = next(it) if has_mask else None
        w_ref = next(it) if has_weight else None
        out_ref = next(it)
        attn_ref = next(it) if emit_attn else None

        q = q_ref[0]                                   # (TQ, D)
        k = k_ref[0]                                   # (Lk, D)
        v = v_ref[0]                                   # (Lk, Dv)

        # scores = q @ k^T, contracting the last dims directly so the MXU
        # consumes k in its native layout (no in-kernel transpose).
        s = lax.dot_general(q, k, dimension_numbers=(((1,), (1,)), ((), ())),
                            preferred_element_type=jnp.float32)   # (TQ, Lk)

        # Same op order as the reference: * st_weight, / temperature, mask.
        if has_weight:
            s = s * w_ref[0].astype(jnp.float32)
        s = s * inv_temp
        if has_mask:
            s = jnp.where(mask_ref[0] != 0, _MASK_FILL, s)

        m = jnp.max(s, axis=-1, keepdims=True)
        e = jnp.exp(s - m)
        denom = jnp.sum(e, axis=-1, keepdims=True)
        attn = e * pl.reciprocal(denom, approx=True)   # EUP reciprocal, off VALU

        # TODO(synk): nn.Dropout(0.1) is identity in eval mode; training-mode
        # dropout (pltpu.prng_random_bits based) is not implemented here.

        if emit_attn:
            attn_ref[0] = attn.astype(attn_ref.dtype)

        out_ref[0] = jnp.dot(attn.astype(v.dtype), v,
                             preferred_element_type=jnp.float32).astype(out_ref.dtype)

    return kernel


def _make_flash_kernel(inv_temp, has_mask, has_weight):
    """KV-tiled path: online softmax with running max / denom in VMEM scratch."""

    def kernel(*refs):
        it = iter(refs)
        q_ref = next(it)
        k_ref = next(it)
        v_ref = next(it)
        mask_ref = next(it) if has_mask else None
        w_ref = next(it) if has_weight else None
        out_ref = next(it)
        m_sc = next(it)      # (TQ, 1)  running max
        l_sc = next(it)      # (TQ, 1)  running denominator
        acc_sc = next(it)    # (TQ, Dv) running numerator

        kv = pl.program_id(2)

        @pl.when(kv == 0)
        def _():
            m_sc[...] = jnp.full_like(m_sc, -jnp.inf)
            l_sc[...] = jnp.zeros_like(l_sc)
            acc_sc[...] = jnp.zeros_like(acc_sc)

        q = q_ref[0]                                   # (TQ, D)
        k = k_ref[0]                                   # (TK, D)
        v = v_ref[0]                                   # (TK, Dv)

        s = lax.dot_general(q, k, dimension_numbers=(((1,), (1,)), ((), ())),
                            preferred_element_type=jnp.float32)   # (TQ, TK)
        if has_weight:
            s = s * w_ref[0].astype(jnp.float32)
        s = s * inv_temp
        if has_mask:
            s = jnp.where(mask_ref[0] != 0, _MASK_FILL, s)

        m_prev = m_sc[...]
        m_new = jnp.maximum(m_prev, jnp.max(s, axis=-1, keepdims=True))
        alpha = jnp.exp(m_prev - m_new)
        p = jnp.exp(s - m_new)
        l_sc[...] = alpha * l_sc[...] + jnp.sum(p, axis=-1, keepdims=True)
        acc_sc[...] = alpha * acc_sc[...] + jnp.dot(
            p.astype(v.dtype), v, preferred_element_type=jnp.float32)
        m_sc[...] = m_new

        # TODO(synk): dropout (eval-mode identity) not implemented.

        @pl.when(kv == pl.num_programs(2) - 1)
        def _():
            out_ref[0] = (acc_sc[...] *
                          pl.reciprocal(l_sc[...], approx=True)).astype(out_ref.dtype)

    return kernel


# --------------------------------------------------------------------------- #
# VMEM accounting / tile selection
# --------------------------------------------------------------------------- #
def _vmem_capacity_bytes():
    try:
        info = pltpu.get_tpu_info()
        cap = getattr(info, "vmem_capacity_bytes", None)
        if cap:
            return int(cap)
    except Exception:
        pass
    return 64 * 1024 * 1024          # conservative default (v7x per-core VMEM)


def _vmem_bytes_full(tq, lk, d, dv, qkv_isz, out_isz, has_mask, w_isz, attn_isz):
    """Per-step footprint: q/out double-buffered, k/v single-buffered (resident)."""
    b = 2 * tq * d * qkv_isz                 # q blocks
    b += lk * (d + dv) * qkv_isz             # k, v resident (single-buffered)
    b += 2 * tq * dv * out_isz               # output blocks
    if has_mask:
        b += 2 * tq * lk * 1                 # int8 mask blocks
    if w_isz:
        b += 2 * tq * lk * w_isz             # st_weight blocks
    if attn_isz:
        b += 2 * tq * lk * attn_isz          # attn output blocks
    b += 4 * tq * lk * 4                     # f32 scores/exp/attn temporaries
    return b


def _vmem_bytes_flash(tq, tk, d, dv, qkv_isz, out_isz, has_mask, w_isz):
    b = 2 * tq * d * qkv_isz + 2 * tk * (d + dv) * qkv_isz + 2 * tq * dv * out_isz
    if has_mask:
        b += 2 * tq * tk * 1
    if w_isz:
        b += 2 * tq * tk * w_isz
    b += 2 * tq * 4 + tq * dv * 4            # m / l / acc scratch
    b += 4 * tq * tk * 4                     # f32 temporaries
    return b


def _min_q_tile(compute_itemsize, has_mask):
    m = 8
    if compute_itemsize == 2:
        m = 16                               # bf16 native tile (16, 128)
    elif compute_itemsize == 1:
        m = 32
    if has_mask:
        m = max(m, 32)                       # int8 mask native tile (32, 128)
    return m


def _tile_candidates(total, min_tile):
    cands = [total]                          # full dim is always legal
    for t in (2048, 1024, 512, 256, 128, 64, 32, 16, 8):
        if t < total and total % t == 0 and t >= min_tile:
            cands.append(t)
    return cands


def _pick_flash_tiles(lq, lk, d, dv, qkv_isz, out_isz, has_mask, w_isz,
                      min_tq, budget, tq=None, tk=None):
    q_cands = [tq] if tq is not None else sorted(_tile_candidates(lq, min_tq),
                                                 reverse=True)
    k_cands = [tk] if tk is not None else sorted(_tile_candidates(lk, 8),
                                                 reverse=True)
    for cq in q_cands:
        for ck in k_cands:
            if _vmem_bytes_flash(cq, ck, d, dv, qkv_isz, out_isz,
                                 has_mask, w_isz) <= budget:
                return cq, ck
    return q_cands[-1], k_cands[-1]


# --------------------------------------------------------------------------- #
# pallas_call builders
# --------------------------------------------------------------------------- #
def _run_full(inputs, *, B, TQ, Lq, Lk, D, Dv, has_mask, has_weight, emit_attn,
              inv_temp, out_dtype, attn_dtype, vmem_limit, cost, single_buffer_kv):
    n_q = Lq // TQ

    def kv_spec(shape):
        index_map = lambda b, qi: (b, 0, 0)
        if single_buffer_kv:
            # k/v block index is constant across the inner Lq axis -> a single
            # buffer suffices; double-buffering only doubled their VMEM cost.
            return pl.BlockSpec(shape, index_map, pipeline_mode=pl.Buffered(1))
        return pl.BlockSpec(shape, index_map)

    in_specs = [
        pl.BlockSpec((1, TQ, D), lambda b, qi: (b, qi, 0)),
        kv_spec((1, Lk, D)),
        kv_spec((1, Lk, Dv)),
    ]
    if has_mask:
        in_specs.append(pl.BlockSpec((1, TQ, Lk), lambda b, qi: (b, qi, 0)))
    if has_weight:
        in_specs.append(pl.BlockSpec((1, TQ, Lk), lambda b, qi: (b, qi, 0)))

    # NOTE: Dv < 128 lowers the output writeback to masked partial stores; for
    # peak store bandwidth callers should fold heads so the last dim is >= 128.
    out_spec = pl.BlockSpec((1, TQ, Dv), lambda b, qi: (b, qi, 0))
    if emit_attn:
        out_shape = (jax.ShapeDtypeStruct((B, Lq, Dv), out_dtype),
                     jax.ShapeDtypeStruct((B, Lq, Lk), attn_dtype))
        out_specs = (out_spec,
                     pl.BlockSpec((1, TQ, Lk), lambda b, qi: (b, qi, 0)))
    else:
        out_shape = jax.ShapeDtypeStruct((B, Lq, Dv), out_dtype)
        out_specs = out_spec

    kernel = _make_full_kernel(inv_temp, has_mask, has_weight, emit_attn)
    return pl.pallas_call(
        kernel,
        out_shape=out_shape,
        grid_spec=pltpu.PrefetchScalarGridSpec(
            num_scalar_prefetch=0,
            grid=(B, n_q),
            in_specs=in_specs,
            out_specs=out_specs,
        ),
        compiler_params=pltpu.CompilerParams(
            dimension_semantics=("parallel", "parallel"),
            vmem_limit_bytes=vmem_limit),
        cost_estimate=cost,
    )(*inputs)


def _run_flash(inputs, *, B, TQ, TK, Lq, Lk, D, Dv, has_mask, has_weight,
               inv_temp, out_dtype, vmem_limit, cost):
    n_q, n_kv = Lq // TQ, Lk // TK

    in_specs = [
        pl.BlockSpec((1, TQ, D), lambda b, qi, kj: (b, qi, 0)),
        pl.BlockSpec((1, TK, D), lambda b, qi, kj: (b, kj, 0)),
        pl.BlockSpec((1, TK, Dv), lambda b, qi, kj: (b, kj, 0)),
    ]
    if has_mask:
        in_specs.append(pl.BlockSpec((1, TQ, TK), lambda b, qi, kj: (b, qi, kj)))
    if has_weight:
        in_specs.append(pl.BlockSpec((1, TQ, TK), lambda b, qi, kj: (b, qi, kj)))

    out_specs = pl.BlockSpec((1, TQ, Dv), lambda b, qi, kj: (b, qi, 0))
    kernel = _make_flash_kernel(inv_temp, has_mask, has_weight)

    return pl.pallas_call(
        kernel,
        out_shape=jax.ShapeDtypeStruct((B, Lq, Dv), out_dtype),
        grid_spec=pltpu.PrefetchScalarGridSpec(
            num_scalar_prefetch=0,
            grid=(B, n_q, n_kv),
            in_specs=in_specs,
            out_specs=out_specs,
            scratch_shapes=[pltpu.VMEM((TQ, 1), jnp.float32),
                            pltpu.VMEM((TQ, 1), jnp.float32),
                            pltpu.VMEM((TQ, Dv), jnp.float32)],
        ),
        compiler_params=pltpu.CompilerParams(
            dimension_semantics=("parallel", "parallel", "arbitrary"),
            vmem_limit_bytes=vmem_limit),
        cost_estimate=cost,
    )(*inputs)


# --------------------------------------------------------------------------- #
# Public wrapper
# --------------------------------------------------------------------------- #
def scaled_dot_product_attention(q, k, v, temperature, mask=None, st_weight=None, *,
                                 return_attn=True, q_tile=None, kv_tile=None,
                                 mxu_bf16=False):
    B, Lq, D = q.shape
    Bk, Lk, Dk = k.shape
    Bv, Lkv, Dv = v.shape
    assert (Bk, Dk) == (B, D) and (Bv, Lkv) == (B, Lk)

    orig_dtype = q.dtype
    out_dtype = orig_dtype
    attn_dtype = orig_dtype              # attn in the input dtype, not forced f32

    # Opt-in bf16 MXU path: halves q/k/v/st_weight HBM+VMEM traffic and runs
    # both matmuls at bf16 MXU rate; accumulation stays f32.
    if mxu_bf16 and orig_dtype == jnp.float32:
        q, k, v = (x.astype(jnp.bfloat16) for x in (q, k, v))
    compute_dtype = q.dtype

    has_mask = mask is not None
    has_weight = st_weight is not None

    inputs = [q, k, v]
    if has_mask:
        inputs.append(mask.astype(jnp.int8))           # 1 B/elem stream
    w_isz = 0
    if has_weight:
        w_dtype = jnp.bfloat16 if mxu_bf16 else jnp.float32
        inputs.append(st_weight.astype(w_dtype))
        w_isz = jnp.dtype(w_dtype).itemsize

    qkv_isz = jnp.dtype(compute_dtype).itemsize
    out_isz = jnp.dtype(out_dtype).itemsize
    attn_isz = jnp.dtype(attn_dtype).itemsize if return_attn else 0

    cap = _vmem_capacity_bytes()
    budget = int(0.70 * cap)             # tile-picker budget
    vmem_limit = int(0.85 * cap)         # compiler hard limit (headroom on top)

    inv_temp = 1.0 / float(temperature)
    min_tq = _min_q_tile(qkv_isz, has_mask)

    cost = pl.CostEstimate(
        flops=int(2 * B * Lq * Lk * (D + Dv)),
        transcendentals=int(B * Lq * Lk),
        bytes_accessed=int(sum(int(x.size) * x.dtype.itemsize for x in inputs)
                           + B * Lq * Dv * out_isz + B * Lq * Lk * attn_isz),
    )

    TQ = int(q_tile) if q_tile is not None else None
    if TQ is not None:
        assert Lq % TQ == 0 and (TQ == Lq or TQ % 8 == 0)

    use_flash = kv_tile is not None
    if not use_flash and TQ is None:
        fitting = [t for t in _tile_candidates(Lq, min_tq)
                   if _vmem_bytes_full(t, Lk, D, Dv, qkv_isz, out_isz,
                                       has_mask, w_isz, attn_isz) <= budget]
        fitting.sort(reverse=True)
        # v7x has 2 TensorCores: with B == 1 keep >= 2 parallel Lq grid steps.
        if B == 1 and len(fitting) > 1 and fitting[0] == Lq:
            fitting = fitting[1:]
        if fitting:
            TQ = fitting[0]
        elif not return_attn:
            use_flash = True             # full-Lk residency can't fit -> KV tiling
        else:
            raise ValueError(
                "k/v full-Lk residency does not fit the VMEM budget for these "
                "shapes; call with return_attn=False to enable the KV-tiled "
                "online-softmax path.")

    if use_flash:
        if return_attn:
            # TODO(synk): emitting the normalized attention matrix under KV
            # tiling needs a second normalization pass; not implemented.
            raise ValueError("return_attn=True is not supported on the KV-tiled "
                             "path; pass return_attn=False.")
        TK = int(kv_tile) if kv_tile is not None else None
        if TK is not None:
            assert Lk % TK == 0 and (TK == Lk or TK % 8 == 0)
        TQ, TK = _pick_flash_tiles(Lq, Lk, D, Dv, qkv_isz, out_isz, has_mask,
                                   w_isz, min_tq, budget, tq=TQ, tk=TK)
        out = _run_flash(inputs, B=B, TQ=TQ, TK=TK, Lq=Lq, Lk=Lk, D=D, Dv=Dv,
                         has_mask=has_mask, has_weight=has_weight,
                         inv_temp=inv_temp, out_dtype=out_dtype,
                         vmem_limit=vmem_limit, cost=cost)
        return out, None

    run = functools.partial(_run_full, inputs, B=B, TQ=TQ, Lq=Lq, Lk=Lk, D=D, Dv=Dv,
                            has_mask=has_mask, has_weight=has_weight,
                            emit_attn=return_attn, inv_temp=inv_temp,
                            out_dtype=out_dtype, attn_dtype=attn_dtype,
                            vmem_limit=vmem_limit, cost=cost)
    try:
        result = run(single_buffer_kv=True)
    except Exception:
        # pl.Buffered(1)/pipeline_mode not accepted on this jax/mosaic build:
        # fall back to default double-buffered k/v specs.
        result = run(single_buffer_kv=False)

    if return_attn:
        out, attn = result
        return out, attn
    return result, None


# --------------------------------------------------------------------------- #
# Reference + self-test
# --------------------------------------------------------------------------- #
def _reference(q, k, v, temperature, mask, st_weight):
    attn = jnp.einsum("bqd,bkd->bqk", q, k)
    if st_weight is not None:
        attn = attn * st_weight
    attn = attn / temperature
    if mask is not None:
        attn = jnp.where(mask, -jnp.inf, attn)
    attn = jax.nn.softmax(attn, axis=2)
    out = jnp.einsum("bqk,bkd->bqd", attn, v)
    return out, attn


if __name__ == "__main__":
    keys = jax.random.split(jax.random.PRNGKey(0), 12)

    D, Dv = 32, 32
    temperature = float(np.sqrt(D))

    # Case 1: small shapes with mask + st_weight (all operand streams, full path).
    B, Lq, Lk = 2, 16, 16
    q = jax.random.normal(keys[0], (B, Lq, D), dtype=jnp.float32)
    k = jax.random.normal(keys[1], (B, Lk, D), dtype=jnp.float32)
    v = jax.random.normal(keys[2], (B, Lk, Dv), dtype=jnp.float32)
    mask = jax.random.bernoulli(keys[3], p=0.2, shape=(B, Lq, Lk))
    mask = mask.at[:, :, 0].set(False)          # keep every row partially unmasked
    st_weight = jax.random.uniform(keys[4], (B, Lq, Lk), dtype=jnp.float32,
                                   minval=0.5, maxval=1.5)

    out, attn = scaled_dot_product_attention(q, k, v, temperature,
                                             mask=mask, st_weight=st_weight)
    jax.block_until_ready((out, attn))
    ref_out, ref_attn = _reference(q, k, v, temperature, mask, st_weight)
    np.testing.assert_allclose(np.asarray(out), np.asarray(ref_out),
                               rtol=2e-3, atol=2e-3)
    np.testing.assert_allclose(np.asarray(attn), np.asarray(ref_attn),
                               rtol=2e-3, atol=2e-3)

    # Case 2: no mask / st_weight, explicit Lq tile (2-D grid, resident k/v).
    B2, Lq2, Lk2 = 2, 128, 128
    q2 = jax.random.normal(keys[5], (B2, Lq2, D), dtype=jnp.float32)
    k2 = jax.random.normal(keys[6], (B2, Lk2, D), dtype=jnp.float32)
    v2 = jax.random.normal(keys[7], (B2, Lk2, Dv), dtype=jnp.float32)

    out2, attn2 = scaled_dot_product_attention(q2, k2, v2, temperature, q_tile=64)
    jax.block_until_ready((out2, attn2))
    ref_out2, ref_attn2 = _reference(q2, k2, v2, temperature, None, None)
    np.testing.assert_allclose(np.asarray(out2), np.asarray(ref_out2),
                               rtol=2e-3, atol=2e-3)
    np.testing.assert_allclose(np.asarray(attn2), np.asarray(ref_attn2),
                               rtol=2e-3, atol=2e-3)

    # Case 3: KV-tiled online-softmax path (mask + st_weight, output only).
    B3, Lq3, Lk3 = 2, 128, 256
    q3 = jax.random.normal(keys[8], (B3, Lq3, D), dtype=jnp.float32)
    k3 = jax.random.normal(keys[9], (B3, Lk3, D), dtype=jnp.float32)
    v3 = jax.random.normal(keys[10], (B3, Lk3, Dv), dtype=jnp.float32)
    mask3 = jax.random.bernoulli(keys[11], p=0.2, shape=(B3, Lq3, Lk3))
    mask3 = mask3.at[:, :, 0].set(False)
    w3 = jax.random.uniform(keys[4], (B3, Lq3, Lk3), dtype=jnp.float32,
                            minval=0.5, maxval=1.5)

    out3, attn3 = scaled_dot_product_attention(
        q3, k3, v3, temperature, mask=mask3, st_weight=w3,
        return_attn=False, q_tile=64, kv_tile=128)
    jax.block_until_ready(out3)
    assert attn3 is None
    ref_out3, _ = _reference(q3, k3, v3, temperature, mask3, w3)
    np.testing.assert_allclose(np.asarray(out3), np.asarray(ref_out3),
                               rtol=2e-3, atol=2e-3)

    # Case 4: opt-in bf16 MXU path (f32 inputs downcast for the MXU).
    out4, _ = scaled_dot_product_attention(q2, k2, v2, temperature,
                                           return_attn=False, mxu_bf16=True,
                                           q_tile=64)
    jax.block_until_ready(out4)
    np.testing.assert_allclose(np.asarray(out4), np.asarray(ref_out2),
                               rtol=5e-2, atol=5e-2)

    print("KERNEL_OK")
</pallas_src>

<mosaic_0001>
module attributes {stable_mosaic.version = 11 : i64} {
  func.func @kernel(%arg0: i32, %arg1: i32, %arg2: memref<1x16x32xf32, #tpu.memory_space<vmem>>, %arg3: memref<1x16x32xf32, #tpu.memory_space<vmem>>, %arg4: memref<1x16x32xf32, #tpu.memory_space<vmem>>, %arg5: memref<1x16x16xi8, #tpu.memory_space<vmem>>, %arg6: memref<1x16x16xf32, #tpu.memory_space<vmem>>, %arg7: memref<1x16x32xf32, #tpu.memory_space<vmem>>, %arg8: memref<1x16x16xf32, #tpu.memory_space<vmem>>) attributes {dimension_semantics = [#tpu.dimension_semantics<parallel>, #tpu.dimension_semantics<parallel>], iteration_bounds = array<i64: 2, 1>, scalar_prefetch = 0 : i64, scratch_operands = 0 : i64, tpu.core_type = #tpu.core_type<tc>, window_params = [{transform_indices = @transform_0, window_bounds = array<i64: 1, 16, 32>}, {pipeline_mode = #tpu.pipeline_mode<synchronous>, transform_indices = @transform_1, window_bounds = array<i64: 1, 16, 32>}, {pipeline_mode = #tpu.pipeline_mode<synchronous>, transform_indices = @transform_2, window_bounds = array<i64: 1, 16, 32>}, {transform_indices = @transform_3, window_bounds = array<i64: 1, 16, 16>}, {transform_indices = @transform_4, window_bounds = array<i64: 1, 16, 16>}, {transform_indices = @transform_5, window_bounds = array<i64: 1, 16, 32>}, {transform_indices = @transform_6, window_bounds = array<i64: 1, 16, 16>}]} {
    %c0 = arith.constant 0 : index
    %c0_0 = arith.constant 0 : index
    %c0_1 = arith.constant 0 : index
    %0 = vector.load %arg2[%c0, %c0_0, %c0_1] : memref<1x16x32xf32, #tpu.memory_space<vmem>>, vector<1x16x32xf32>
    %1 = vector.shape_cast %0 : vector<1x16x32xf32> to vector<16x32xf32>
    %c0_2 = arith.constant 0 : index
    %c0_3 = arith.constant 0 : index
    %c0_4 = arith.constant 0 : index
    %2 = vector.load %arg3[%c0_2, %c0_3, %c0_4] : memref<1x16x32xf32, #tpu.memory_space<vmem>>, vector<1x16x32xf32>
    %3 = vector.shape_cast %2 : vector<1x16x32xf32> to vector<16x32xf32>
    %c0_5 = arith.constant 0 : index
    %c0_6 = arith.constant 0 : index
    %c0_7 = arith.constant 0 : index
    %4 = vector.load %arg4[%c0_5, %c0_6, %c0_7] : memref<1x16x32xf32, #tpu.memory_space<vmem>>, vector<1x16x32xf32>
    %5 = vector.shape_cast %4 : vector<1x16x32xf32> to vector<16x32xf32>
    %cst = arith.constant dense<0.000000e+00> : vector<16x16xf32>
    %6 = tpu.matmul %1, %3, %cst {dimension_numbers = #tpu.dot_dimension_numbers<[1], [1], [0], [0], [0, 0, 1, 0], [], []>} : vector<16x32xf32>, vector<16x32xf32>, vector<16x16xf32> -> vector<16x16xf32>
    %c0_8 = arith.constant 0 : index
    %c0_9 = arith.constant 0 : index
    %c0_10 = arith.constant 0 : index
    %7 = vector.load %arg6[%c0_8, %c0_9, %c0_10] : memref<1x16x16xf32, #tpu.memory_space<vmem>>, vector<1x16x16xf32>
    %8 = vector.shape_cast %7 : vector<1x16x16xf32> to vector<16x16xf32>
    %9 = arith.mulf %6, %8 : vector<16x16xf32>
    %cst_11 = arith.constant 0.176776692 : f32
    %10 = vector.broadcast %cst_11 : f32 to vector<16x16xf32>
    %11 = arith.mulf %9, %10 : vector<16x16xf32>
    %c0_12 = arith.constant 0 : index
    %c0_13 = arith.constant 0 : index
    %c0_14 = arith.constant 0 : index
    %12 = vector.load %arg5[%c0_12, %c0_13, %c0_14] : memref<1x16x16xi8, #tpu.memory_space<vmem>>, vector<1x16x16xi8>
    %13 = vector.shape_cast %12 : vector<1x16x16xi8> to vector<16x16xi8>
    %c0_i8 = arith.constant 0 : i8
    %14 = vector.broadcast %c0_i8 : i8 to vector<16x16xi8>
    %15 = arith.cmpi ne, %13, %14 : vector<16x16xi8>
    %cst_15 = arith.constant -1.000000e+30 : f32
    %16 = vector.broadcast %cst_15 : f32 to vector<16x16xf32>
    %17 = arith.select %15, %16, %11 : vector<16x16xi1>, vector<16x16xf32>
    %cst_16 = arith.constant dense<0xFF800000> : vector<16xf32>
    %18 = vector.multi_reduction <maximumf>, %17, %cst_16 [1] : vector<16x16xf32> to vector<16xf32>
    %19 = vector.shape_cast %18 : vector<16xf32> to vector<16x1xf32>
    %20 = vector.broadcast %19 : vector<16x1xf32> to vector<16x16xf32>
    %21 = arith.subf %17, %20 : vector<16x16xf32>
    %22 = math.exp %21 : vector<16x16xf32>
    %cst_17 = arith.constant dense<0.000000e+00> : vector<16xf32>
    %23 = vector.multi_reduction <add>, %22, %cst_17 [1] : vector<16x16xf32> to vector<16xf32>
    %24 = vector.shape_cast %23 : vector<16xf32> to vector<16x1xf32>
    %25 = tpu.reciprocal %24 {approx = true} : vector<16x1xf32> -> vector<16x1xf32>
    %26 = vector.broadcast %25 : vector<16x1xf32> to vector<16x16xf32>
    %27 = arith.mulf %22, %26 : vector<16x16xf32>
    %c0_18 = arith.constant 0 : index
    %c0_19 = arith.constant 0 : index
    %c0_20 = arith.constant 0 : index
    %28 = vector.load %arg8[%c0_18, %c0_19, %c0_20] : memref<1x16x16xf32, #tpu.memory_space<vmem>>, vector<1x16x16xf32>
    %29 = vector.shape_cast %28 : vector<1x16x16xf32> to vector<16x16xf32>
    %30 = vector.shape_cast %27 : vector<16x16xf32> to vector<1x16x16xf32>
    tpu.vector_store %arg8[%c0_18, %c0_19, %c0_20], %30 {strides = array<i32>} : memref<1x16x16xf32, #tpu.memory_space<vmem>>, vector<1x16x16xf32>,
    %cst_21 = arith.constant dense<0.000000e+00> : vector<16x32xf32>
    %31 = tpu.matmul %27, %5, %cst_21 {dimension_numbers = #tpu.dot_dimension_numbers<[1], [0], [0], [1], [0, 0, 1, 1], [], []>} : vector<16x16xf32>, vector<16x32xf32>, vector<16x32xf32> -> vector<16x32xf32>
    %c0_22 = arith.constant 0 : index
    %c0_23 = arith.constant 0 : index
    %c0_24 = arith.constant 0 : index
    %32 = vector.load %arg7[%c0_22, %c0_23, %c0_24] : memref<1x16x32xf32, #tpu.memory_space<vmem>>, vector<1x16x32xf32>
    %33 = vector.shape_cast %32 : vector<1x16x32xf32> to vector<16x32xf32>
    %34 = vector.shape_cast %31 : vector<16x32xf32> to vector<1x16x32xf32>
    tpu.vector_store %arg7[%c0_22, %c0_23, %c0_24], %34 {strides = array<i32>} : memref<1x16x32xf32, #tpu.memory_space<vmem>>, vector<1x16x32xf32>,
    return
  }
  func.func @transform_0(%arg0: i32, %arg1: i32) -> (i32, i32, i32) {
    %c0_i32 = arith.constant 0 : i32
    %c0_i32_0 = arith.constant 0 : i32
    return %arg0, %arg1, %c0_i32 : i32, i32, i32
  }
  func.func @transform_1(%arg0: i32, %arg1: i32) -> (i32, i32, i32) {
    %c0_i32 = arith.constant 0 : i32
    %c0_i32_0 = arith.constant 0 : i32
    %c0_i32_1 = arith.constant 0 : i32
    return %arg0, %c0_i32, %c0_i32_0 : i32, i32, i32
  }
  func.func @transform_2(%arg0: i32, %arg1: i32) -> (i32, i32, i32) {
    %c0_i32 = arith.constant 0 : i32
    %c0_i32_0 = arith.constant 0 : i32
    %c0_i32_1 = arith.constant 0 : i32
    return %arg0, %c0_i32, %c0_i32_0 : i32, i32, i32
  }
  func.func @transform_3(%arg0: i32, %arg1: i32) -> (i32, i32, i32) {
    %c0_i32 = arith.constant 0 : i32
    %c0_i32_0 = arith.constant 0 : i32
    return %arg0, %arg1, %c0_i32 : i32, i32, i32
  }
  func.func @transform_4(%arg0: i32, %arg1: i32) -> (i32, i32, i32) {
    %c0_i32 = arith.constant 0 : i32
    %c0_i32_0 = arith.constant 0 : i32
    return %arg0, %arg1, %c0_i32 : i32, i32, i32
  }
  func.func @transform_5(%arg0: i32, %arg1: i32) -> (i32, i32, i32) {
    %c0_i32 = arith.constant 0 : i32
    %c0_i32_0 = arith.constant 0 : i32
    return %arg0, %arg1, %c0_i32 : i32, i32, i32
  }
  func.func @transform_6(%arg0: i32, %arg1: i32) -> (i32, i32, i32) {
    %c0_i32 = arith.constant 0 : i32
    %c0_i32_0 = arith.constant 0 : i32
    return %arg0, %arg1, %c0_i32 : i32, i32, i32
  }
}

module attributes {stable_mosaic.version = 11 : i64} {
  func.func @kernel(%arg0: i32, %arg1: i32, %arg2: memref<1x16x32xf32, #tpu.memory_space<vmem>>, %arg3: memref<1x16x32xf32, #tpu.memory_space<vmem>>, %arg4: memref<1x16x32xf32, #tpu.memory_space<vmem>>, %arg5: memref<1x16x16xi8, #tpu.memory_space<vmem>>, %arg6: memref<1x16x16xf32, #tpu.memory_space<vmem>>, %arg7: memref<1x16x32xf32, #tpu.memory_space<vmem>>, %arg8: memref<1x16x16xf32, #tpu.memory_space<vmem>>) attributes {dimension_semantics = [#tpu.dimension_semantics<parallel>, #tpu.dimension_semantics<parallel>], iteration_bounds = array<i64: 2, 1>, scalar_prefetch = 0 : i64, scratch_operands = 0 : i64, tpu.core_type = #tpu.core_type<tc>, window_params = [{transform_indices = @transform_0, window_bounds = array<i64: 1, 16, 32>}, {transform_indices = @transform_1, window_bounds = array<i64: 1, 16, 32>}, {transform_indices = @transform_2, window_bounds = array<i64: 1, 16, 32>}, {transform_indices = @transform_3, window_bounds = array<i64: 1, 16, 16>}, {transform_indices = @transform_4, window_bounds = array<i64: 1, 16, 16>}, {transform_indices = @transform_5, window_bounds = array<i64: 1, 16, 32>}, {transform_indices = @transform_6, window_bounds = array<i64: 1, 16, 16>}]} {
    %c0 = arith.constant 0 : index
    %c0_0 = arith.constant 0 : index
    %c0_1 = arith.constant 0 : index
    %0 = vector.load %arg2[%c0, %c0_0, %c0_1] : memref<1x16x32xf32, #tpu.memory_space<vmem>>, vector<1x16x32xf32>
    %1 = vector.shape_cast %0 : vector<1x16x32xf32> to vector<16x32xf32>
    %c0_2 = arith.constant 0 : index
    %c0_3 = arith.constant 0 : index
    %c0_4 = arith.constant 0 : index
    %2 = vector.load %arg3[%c0_2, %c0_3, %c0_4] : memref<1x16x32xf32, #tpu.memory_space<vmem>>, vector<1x16x32xf32>
    %3 = vector.shape_cast %2 : vector<1x16x32xf32> to vector<16x32xf32>
    %c0_5 = arith.constant 0 : index
    %c0_6 = arith.constant 0 : index
    %c0_7 = arith.constant 0 : index
    %4 = vector.load %arg4[%c0_5, %c0_6, %c0_7] : memref<1x16x32xf32, #tpu.memory_space<vmem>>, vector<1x16x32xf32>
    %5 = vector.shape_cast %4 : vector<1x16x32xf32> to vector<16x32xf32>
    %cst = arith.constant dense<0.000000e+00> : vector<16x16xf32>
    %6 = tpu.matmul %1, %3, %cst {dimension_numbers = #tpu.dot_dimension_numbers<[1], [1], [0], [0], [0, 0, 1, 0], [], []>} : vector<16x32xf32>, vector<16x32xf32>, vector<16x16xf32> -> vector<16x16xf32>
    %c0_8 = arith.constant 0 : index
    %c0_9 = arith.constant 0 : index
    %c0_10 = arith.constant 0 : index
    %7 = vector.load %arg6[%c0_8, %c0_9, %c0_10] : memref<1x16x16xf32, #tpu.memory_space<vmem>>, vector<1x16x16xf32>
    %8 = vector.shape_cast %7 : vector<1x16x16xf32> to vector<16x16xf32>
    %9 = arith.mulf %6, %8 : vector<16x16xf32>
    %cst_11 = arith.constant 0.176776692 : f32
    %10 = vector.broadcast %cst_11 : f32 to vector<16x16xf32>
    %11 = arith.mulf %9, %10 : vector<16x16xf32>
    %c0_12 = arith.constant 0 : index
    %c0_13 = arith.constant 0 : index
    %c0_14 = arith.constant 0 : index
    %12 = vector.load %arg5[%c0_12, %c0_13, %c0_14] : memref<1x16x16xi8, #tpu.memory_space<vmem>>, vector<1x16x16xi8>
    %13 = vector.shape_cast %12 : vector<1x16x16xi8> to vector<16x16xi8>
    %c0_i8 = arith.constant 0 : i8
    %14 = vector.broadcast %c0_i8 : i8 to vector<16x16xi8>
    %15 = arith.cmpi ne, %13, %14 : vector<16x16xi8>
    %cst_15 = arith.constant -1.000000e+30 : f32
    %16 = vector.broadcast %cst_15 : f32 to vector<16x16xf32>
    %17 = arith.select %15, %16, %11 : vector<16x16xi1>, vector<16x16xf32>
    %cst_16 = arith.constant dense<0xFF800000> : vector<16xf32>
    %18 = vector.multi_reduction <maximumf>, %17, %cst_16 [1] : vector<16x16xf32> to vector<16xf32>
    %19 = vector.shape_cast %18 : vector<16xf32> to vector<16x1xf32>
    %20 = vector.broadcast %19 : vector<16x1xf32> to vector<16x16xf32>
    %21 = arith.subf %17, %20 : vector<16x16xf32>
    %22 = math.exp %21 : vector<16x16xf32>
    %cst_17 = arith.constant dense<0.000000e+00> : vector<16xf32>
    %23 = vector.multi_reduction <add>, %22, %cst_17 [1] : vector<16x16xf32> to vector<16xf32>
    %24 = vector.shape_cast %23 : vector<16xf32> to vector<16x1xf32>
    %25 = tpu.reciprocal %24 {approx = true} : vector<16x1xf32> -> vector<16x1xf32>
    %26 = vector.broadcast %25 : vector<16x1xf32> to vector<16x16xf32>
    %27 = arith.mulf %22, %26 : vector<16x16xf32>
    %c0_18 = arith.constant 0 : index
    %c0_19 = arith.constant 0 : index
    %c0_20 = arith.constant 0 : index
    %28 = vector.load %arg8[%c0_18, %c0_19, %c0_20] : memref<1x16x16xf32, #tpu.memory_space<vmem>>, vector<1x16x16xf32>
    %29 = vector.shape_cast %28 : vector<1x16x16xf32> to vector<16x16xf32>
    %30 = vector.shape_cast %27 : vector<16x16xf32> to vector<1x16x16xf32>
    tpu.vector_store %arg8[%c0_18, %c0_19, %c0_20], %30 {strides = array<i32>} : memref<1x16x16xf32, #tpu.memory_space<vmem>>, vector<1x16x16xf32>,
    %cst_21 = arith.constant dense<0.000000e+00> : vector<16x32xf32>
    %31 = tpu.matmul %27, %5, %cst_21 {dimension_numbers = #tpu.dot_dimension_numbers<[1], [0], [0], [1], [0, 0, 1, 1], [], []>} : vector<16x16xf32>, vector<16x32xf32>, vector<16x32xf32> -> vector<16x32xf32>
    %c0_22 = arith.constant 0 : index
    %c0_23 = arith.constant 0 : index
    %c0_24 = arith.constant 0 : index
    %32 = vector.load %arg7[%c0_22, %c0_23, %c0_24] : memref<1x16x32xf32, #tpu.memory_space<vmem>>, vector<1x16x32xf32>
    %33 = vector.shape_cast %32 : vector<1x16x32xf32> to vector<16x32xf32>
    %34 = vector.shape_cast %31 : vector<16x32xf32> to vector<1x16x32xf32>
    tpu.vector_store %arg7[%c0_22, %c0_23, %c0_24], %34 {strides = array<i32>} : memref<1x16x32xf32, #tpu.memory_space<vmem>>, vector<1x16x32xf32>,
    return
  }
  func.func @transform_0(%arg0: i32, %arg1: i32) -> (i32, i32, i32) {
    %c0_i32 = arith.constant 0 : i32
    %c0_i32_0 = arith.constant 0 : i32
    return %arg0, %arg1, %c0_i32 : i32, i32, i32
  }
  func.func @transform_1(%arg0: i32, %arg1: i32) -> (i32, i32, i32) {
    %c0_i32 = arith.constant 0 : i32
    %c0_i32_0 = arith.constant 0 : i32
    %c0_i32_1 = arith.constant 0 : i32
    return %arg0, %c0_i32, %c0_i32_0 : i32, i32, i32
  }
  func.func @transform_2(%arg0: i32, %arg1: i32) -> (i32, i32, i32) {
    %c0_i32 = arith.constant 0 : i32
    %c0_i32_0 = arith.constant 0 : i32
    %c0_i32_1 = arith.constant 0 : i32
    return %arg0, %c0_i32, %c0_i32_0 : i32, i32, i32
  }
  func.func @transform_3(%arg0: i32, %arg1: i32) -> (i32, i32, i32) {
    %c0_i32 = arith.constant 0 : i32
    %c0_i32_0 = arith.constant 0 : i32
    return %arg0, %arg1, %c0_i32 : i32, i32, i32
  }
  func.func @transform_4(%arg0: i32, %arg1: i32) -> (i32, i32, i32) {
    %c0_i32 = arith.constant 0 : i32
    %c0_i32_0 = arith.constant 0 : i32
    return %arg0, %arg1, %c0_i32 : i32, i32, i32
  }
  func.func @transform_5(%arg0: i32, %arg1: i32) -> (i32, i32, i32) {
    %c0_i32 = arith.constant 0 : i32
    %c0_i32_0 = arith.constant 0 : i32
    return %arg0, %arg1, %c0_i32 : i32, i32, i32
  }
  func.func @transform_6(%arg0: i32, %arg1: i32) -> (i32, i32, i32) {
    %c0_i32 = arith.constant 0 : i32
    %c0_i32_0 = arith.constant 0 : i32
    return %arg0, %arg1, %c0_i32 : i32, i32, i32
  }
}

</mosaic_0001>

<llo_original>
// kernel: tpu_custom_call.1
$region0: #{tpu_custom_call.1}
  #allocation0 [shape = 'u32[]', space=smem, size = 0x4, offset = 0x4, fixed_abs, tag = 'smem constant byte address 0x4 - core index']
  #allocation1 [shape = 'u32[144,128]{1,0:T(1,128)}', space=vmem, size = 0x12000, scoped, tag = 'internal scratch']
  %s0 = inlined_call_operand.hbm [shape: f32[2,16,32], index: 0, kind: input, shape index: {}]
  %s1 = inlined_call_operand.hbm [shape: f32[2,16,32], index: 1, kind: input, shape index: {}]
  %s2 = inlined_call_operand.hbm [shape: f32[2,16,32], index: 2, kind: input, shape index: {}]
  %s3 = inlined_call_operand.hbm [shape: s8[2,16,16], index: 3, kind: input, shape index: {}]
  %s4 = inlined_call_operand.hbm [shape: f32[2,16,16], index: 4, kind: input, shape index: {}]
  %s5 = inlined_call_operand.hbm [shape: f32[2,16,32], index: 5, kind: output, shape index: {0}]
  %s6 = inlined_call_operand.hbm [shape: f32[2,16,16], index: 6, kind: output, shape index: {1}]
  %7 = xla_tuple %s5, %s6
  %s8 = sld [smem:[#allocation0]]
  $region81: #{tpu_custom_call.1} parent=0
    _
  %s10 = ssub.s32 1, %s8
  %s11 = scalar_select 0, %s10, %s8
  $region1: #{tpu_custom_call.1} parent=0
    #allocation2 [shape = 'u8[16384]{0}', space=vmem, size = 0x4000, scoped, tag = 'input window, operand 0']
    #allocation3 [shape = 's32[2]{0}', space=sflag, size = 0x8, scoped, tag = 'scoped memory for tpu_custom_call.1']
    #allocation4 [shape = 's32[2]{0}', space=sflag, size = 0x8, scoped, tag = 'scoped memory for tpu_custom_call.1']
    #allocation5 [shape = 'u8[8192]{0}', space=vmem, size = 0x2000, scoped, tag = 'input window, operand 1, single buffered']
    #allocation6 [shape = 's32[1]{0}', space=sflag, size = 0x4, scoped, tag = 'scoped memory for tpu_custom_call.1']
    #allocation7 [shape = 'u8[8192]{0}', space=vmem, size = 0x2000, scoped, tag = 'input window, operand 2, single buffered']
    #allocation8 [shape = 'u8[4096]{0}', space=vmem, size = 0x1000, scoped, tag = 'input window, operand 3']
    #allocation9 [shape = 's32[2]{0}', space=sflag, size = 0x8, scoped, tag = 'scoped memory for tpu_custom_call.1']
    #allocation10 [shape = 'u8[16384]{0}', space=vmem, size = 0x4000, scoped, tag = 'input window, operand 4']
    #allocation11 [shape = 'u8[16384]{0}', space=vmem, size = 0x4000, scoped, tag = 'output window, operand 0']
    #allocation12 [shape = 'u8[16384]{0}', space=vmem, size = 0x4000, scoped, tag = 'output window, operand 1']
    #allocation13 [shape = 's32[2]{0}', space=sflag, size = 0x8, scoped, tag = 'scoped memory for tpu_custom_call.1']
    %12 = vsyncpa [#allocation3], 0
    %s13 = scalar_lea.sflag [#allocation3], 1
    %14 = vsyncpa %s13, 0
    %15 = vsyncpa [#allocation6], 0
    %16 = vsyncpa [#allocation9], 0
    %s17 = scalar_lea.sflag [#allocation9], 1
    %18 = vsyncpa %s17, 0
    %19 = vsyncpa [#allocation4], 0
    %s20 = scalar_lea.sflag [#allocation4], 1
    %21 = vsyncpa %s20, 0
    %22 = vsyncpa [#allocation13], 0
    %s23 = scalar_lea.sflag [#allocation13], 1
    %24 = vsyncpa %s23, 0
    loop: start=0, step=1, limit=4
    $region2: #{tpu_custom_call.1} parent=1 // loop_pre_header
      _
    $region3: #{tpu_custom_call.1} parent=1 // loop_header
      %s26 = sphi 0, %s30
      %p27 = scmp.ge.s32.totalorder %s26, 4
      %s33 = sphi 0, %s45
      %s34 = sphi 0, %s41
      %s35 = sphi 0, %s33
      %s36 = sphi 0, %s34
      %s37 = sphi 0, %s35
      %s38 = sphi 0, %s36
      %s50 = sphi 0, %s52
      %s53 = sphi 0, %s50
      %s54 = sphi 0, %s53
      %s70 = sphi 0, %s54
      %s76 = sphi 0, %s78
      %s79 = sphi 0, %s76
      %s80 = sphi 0, %s79
      %s96 = sphi 0, %s80
      %s102 = sphi 0, %s104
      %s105 = sphi 0, %s102
      %s106 = sphi 0, %s105
      %s122 = sphi 0, %s106
      %s130 = sphi 0, %s132
      %s133 = sphi 0, %s130
      %s134 = sphi 0, %s133
      %s150 = sphi 0, %s134
      %s158 = sphi 0, %s160
      %s161 = sphi 0, %s158
      %s162 = sphi 0, %s161
      %s178 = sphi 0, %s162
      %s186 = sphi 0, %s188
      %s189 = sphi 0, %s186
      %s190 = sphi 0, %s189
      %s206 = sphi 0, %s190
      %s214 = sphi 0, %s216
      %s217 = sphi 0, %s214
      %s218 = sphi 0, %s217
      %s234 = sphi 0, %s218
    $region4: #{tpu_custom_call.1} parent=1 // loop_header_branch
      %29 = sbr.rel (%p27) target = $region8
    $region5: #{tpu_custom_call.1} parent=1 // loop_body
      %s31 = ssub.s32 %s26, 1
      %s32 = ssub.s32 %s26, 2
      %s39 = sadd.s32 1, %s34
      %p40 = scmp.ge.s32.totalorder %s39, 1
      %s41 = scalar_select %p40, 0, %s39
      %s42 = sadd.s32 1, %s33
      %s43 = scalar_select %p40, %s42, %s33
      %p44 = scmp.ge.s32.totalorder %s43, 2
      %s45 = scalar_select %p44, 0, %s43
      %s46 = ssub.s32 %s33, %s45
      %s47 = ssub.s32 %s34, %s41
      %s48 = sor.u32 %s46, %s47
      %p49 = scmp.eq.s32.totalorder %s48, 0
      %s51 = sadd.s32 %s50, 1
      %s52 = scalar_select %p49, %s50, %s51
      %p55 = pneg %p49
      %p56 = scmp.eq.s32.totalorder %s26, 1
      %p57 = por %p55, %p56
      %p58 = scmp.ne.s32.totalorder %s50, %s53
      %p59 = scmp.eq.s32.totalorder %s26, 0
      %p60 = por %p58, %p59
      %p61 = scmp.ne.s32.totalorder %s50, %s53
      %p62 = scmp.eq.s32.totalorder %s31, 1
      %p63 = por %p61, %p62
      %p64 = scmp.ne.s32.totalorder %s53, %s54
      %p65 = scmp.eq.s32.totalorder %s31, 0
      %p66 = por %p64, %p65
      %p67 = scmp.ne.s32.totalorder %s53, %s54
      %p68 = scmp.eq.s32.totalorder %s32, 1
      %p69 = por %p67, %p68
      %p71 = scmp.ne.s32.totalorder %s54, %s70
      %p72 = scmp.eq.s32.totalorder %s32, 0
      %p73 = por %p71, %p72
      %s74 = ssub.s32 %s33, %s45
      %p75 = scmp.eq.s32.totalorder %s74, 0
      %s77 = sadd.s32 %s76, 1
      %s78 = scalar_select %p75, %s76, %s77
      %p81 = pneg %p75
      %p82 = scmp.eq.s32.totalorder %s26, 1
      %p83 = por %p81, %p82
      %p84 = scmp.ne.s32.totalorder %s76, %s79
      %p85 = scmp.eq.s32.totalorder %s26, 0
      %p86 = por %p84, %p85
      %p87 = scmp.ne.s32.totalorder %s76, %s79
      %p88 = scmp.eq.s32.totalorder %s31, 1
      %p89 = por %p87, %p88
      %p90 = scmp.ne.s32.totalorder %s79, %s80
      %p91 = scmp.eq.s32.totalorder %s31, 0
      %p92 = por %p90, %p91
      %p93 = scmp.ne.s32.totalorder %s79, %s80
      %p94 = scmp.eq.s32.totalorder %s32, 1
      %p95 = por %p93, %p94
      %p97 = scmp.ne.s32.totalorder %s80, %s96
      %p98 = scmp.eq.s32.totalorder %s32, 0
      %p99 = por %p97, %p98
      %s100 = ssub.s32 %s33, %s45
      %p101 = scmp.eq.s32.totalorder %s100, 0
      %s103 = sadd.s32 %s102, 1
      %s104 = scalar_select %p101, %s102, %s103
      %p107 = pneg %p101
      %p108 = scmp.eq.s32.totalorder %s26, 1
      %p109 = por %p107, %p108
      %p110 = scmp.ne.s32.totalorder %s102, %s105
      %p111 = scmp.eq.s32.totalorder %s26, 0
      %p112 = por %p110, %p111
      %p113 = scmp.ne.s32.totalorder %s102, %s105
      %p114 = scmp.eq.s32.totalorder %s31, 1
      %p115 = por %p113, %p114
      %p116 = scmp.ne.s32.totalorder %s105, %s106
      %p117 = scmp.eq.s32.totalorder %s31, 0
      %p118 = por %p116, %p117
      %p119 = scmp.ne.s32.totalorder %s105, %s106
      %p120 = scmp.eq.s32.totalorder %s32, 1
      %p121 = por %p119, %p120
      %p123 = scmp.ne.s32.totalorder %s106, %s122
      %p124 = scmp.eq.s32.totalorder %s32, 0
      %p125 = por %p123, %p124
      %s126 = ssub.s32 %s33, %s45
      %s127 = ssub.s32 %s34, %s41
      %s128 = sor.u32 %s126, %s127
      %p129 = scmp.eq.s32.totalorder %s128, 0
      %s131 = sadd.s32 %s130, 1
      %s132 = scalar_select %p129, %s130, %s131
      %p135 = pneg %p129
      %p136 = scmp.eq.s32.totalorder %s26, 1
      %p137 = por %p135, %p136
      %p138 = scmp.ne.s32.totalorder %s130, %s133
      %p139 = scmp.eq.s32.totalorder %s26, 0
      %p140 = por %p138, %p139
      %p141 = scmp.ne.s32.totalorder %s130, %s133
      %p142 = scmp.eq.s32.totalorder %s31, 1
      %p143 = por %p141, %p142
      %p144 = scmp.ne.s32.totalorder %s133, %s134
      %p145 = scmp.eq.s32.totalorder %s31, 0
      %p146 = por %p144, %p145
      %p147 = scmp.ne.s32.totalorder %s133, %s134
      %p148 = scmp.eq.s32.totalorder %s32, 1
      %p149 = por %p147, %p148
      %p151 = scmp.ne.s32.totalorder %s134, %s150
      %p152 = scmp.eq.s32.totalorder %s32, 0
      %p153 = por %p151, %p152
      %s154 = ssub.s32 %s33, %s45
      %s155 = ssub.s32 %s34, %s41
      %s156 = sor.u32 %s154, %s155
      %p157 = scmp.eq.s32.totalorder %s156, 0
      %s159 = sadd.s32 %s158, 1
      %s160 = scalar_select %p157, %s158, %s159
      %p163 = pneg %p157
      %p164 = scmp.eq.s32.totalorder %s26, 1
      %p165 = por %p163, %p164
      %p166 = scmp.ne.s32.totalorder %s158, %s161
      %p167 = scmp.eq.s32.totalorder %s26, 0
      %p168 = por %p166, %p167
      %p169 = scmp.ne.s32.totalorder %s158, %s161
      %p170 = scmp.eq.s32.totalorder %s31, 1
      %p171 = por %p169, %p170
      %p172 = scmp.ne.s32.totalorder %s161, %s162
      %p173 = scmp.eq.s32.totalorder %s31, 0
      %p174 = por %p172, %p173
      %p175 = scmp.ne.s32.totalorder %s161, %s162
      %p176 = scmp.eq.s32.totalorder %s32, 1
      %p177 = por %p175, %p176
      %p179 = scmp.ne.s32.totalorder %s162, %s178
      %p180 = scmp.eq.s32.totalorder %s32, 0
      %p181 = por %p179, %p180
      %s182 = ssub.s32 %s33, %s45
      %s183 = ssub.s32 %s34, %s41
      %s184 = sor.u32 %s182, %s183
      %p185 = scmp.eq.s32.totalorder %s184, 0
      %s187 = sadd.s32 %s186, 1
      %s188 = scalar_select %p185, %s186, %s187
      %p191 = pneg %p185
      %p192 = scmp.eq.s32.totalorder %s26, 1
      %p193 = por %p191, %p192
      %p194 = scmp.ne.s32.totalorder %s186, %s189
      %p195 = scmp.eq.s32.totalorder %s26, 0
      %p196 = por %p194, %p195
      %p197 = scmp.ne.s32.totalorder %s186, %s189
      %p198 = scmp.eq.s32.totalorder %s31, 1
      %p199 = por %p197, %p198
      %p200 = scmp.ne.s32.totalorder %s189, %s190
      %p201 = scmp.eq.s32.totalorder %s31, 0
      %p202 = por %p200, %p201
      %p203 = scmp.ne.s32.totalorder %s189, %s190
      %p204 = scmp.eq.s32.totalorder %s32, 1
      %p205 = por %p203, %p204
      %p207 = scmp.ne.s32.totalorder %s190, %s206
      %p208 = scmp.eq.s32.totalorder %s32, 0
      %p209 = por %p207, %p208
      %s210 = ssub.s32 %s33, %s45
      %s211 = ssub.s32 %s34, %s41
      %s212 = sor.u32 %s210, %s211
      %p213 = scmp.eq.s32.totalorder %s212, 0
      %s215 = sadd.s32 %s214, 1
      %s216 = scalar_select %p213, %s214, %s215
      %p219 = pneg %p213
      %p220 = scmp.eq.s32.totalorder %s26, 1
      %p221 = por %p219, %p220
      %p222 = scmp.ne.s32.totalorder %s214, %s217
      %p223 = scmp.eq.s32.totalorder %s26, 0
      %p224 = por %p222, %p223
      %p225 = scmp.ne.s32.totalorder %s214, %s217
      %p226 = scmp.eq.s32.totalorder %s31, 1
      %p227 = por %p225, %p226
      %p228 = scmp.ne.s32.totalorder %s217, %s218
      %p229 = scmp.eq.s32.totalorder %s31, 0
      %p230 = por %p228, %p229
      %p231 = scmp.ne.s32.totalorder %s217, %s218
      %p232 = scmp.eq.s32.totalorder %s32, 1
      %p233 = por %p231, %p232
      %p235 = scmp.ne.s32.totalorder %s218, %s234
      %p236 = scmp.eq.s32.totalorder %s32, 0
      %p237 = por %p235, %p236
      %p238 = scmp.le.s32.totalorder 1, %s26
      %p239 = scmp.lt.s32.totalorder %s26, 3
      %p240 = pnand %p238, %p239
      %p241 = pneg %p240
      // Predicated region
      $region9: #{tpu_custom_call.1} parent=5 // pred_check
        _
      $region10: #{tpu_custom_call.1} parent=5 // pred_check_branch
        %243 = sbr.rel (%p240) target = $region12
      $region11: #{tpu_custom_call.1} parent=5 // pred_region
        %s244 = ssub.s32 %s26, 1
        // Predicated region
        $region13: #{tpu_custom_call.1} parent=11 // pred_check
          %p245 = pneg %p92
        $region14: #{tpu_custom_call.1} parent=11 // pred_check_branch
          %247 = sbr.rel (%p245) target = $region16
        $region15: #{tpu_custom_call.1} parent=11 // pred_region
          %s249 = ssub.s32 256, 256
          %250 = vsyncadd [#allocation6], %s249
          %s251 = smul.addr %s35, 2
          %s252 = smul.addr %s251, 128
          %s253 = scalar_lea.hbm %s1, %s252
          %s254 = sshll.u32 [#allocation5], 4
          %s255 = int_to_ptr.vmem [resolvable:$true] %s254
          %260 = dma.hbm_to_vmem [thread:$0]  %s253, 256, %s255, [#allocation6], 128, 128, 8
        $region16: #{tpu_custom_call.1} parent=11 // pred_fallthru
          _
        // Predicated region
        $region17: #{tpu_custom_call.1} parent=11 // pred_check
          %p261 = pneg %p118
        $region18: #{tpu_custom_call.1} parent=11 // pred_check_branch
          %263 = sbr.rel (%p261) target = $region20
        $region19: #{tpu_custom_call.1} parent=11 // pred_region
          %s265 = ssub.s32 256, 256
          %266 = vsyncadd [#allocation6], %s265
          %s267 = smul.addr %s35, 2
          %s268 = smul.addr %s267, 128
          %s269 = scalar_lea.hbm %s2, %s268
          %s270 = sshll.u32 [#allocation7], 4
          %s271 = int_to_ptr.vmem [resolvable:$true] %s270
          %276 = dma.hbm_to_vmem [thread:$0]  %s269, 256, %s271, [#allocation6], 128, 128, 8
        $region20: #{tpu_custom_call.1} parent=11 // pred_fallthru
          _
      $region12: #{tpu_custom_call.1} parent=5 // pred_fallthru
        _
      %p277 = scmp.lt.s32.totalorder %s26, 2
      // Predicated region
      $region21: #{tpu_custom_call.1} parent=5 // pred_check
        %p278 = pneg %p277
      $region22: #{tpu_custom_call.1} parent=5 // pred_check_branch
        %280 = sbr.rel (%p278) target = $region24
      $region23: #{tpu_custom_call.1} parent=5 // pred_region
        // Predicated region
        $region25: #{tpu_custom_call.1} parent=23 // pred_check
          %p281 = pneg %p60
        $region26: #{tpu_custom_call.1} parent=23 // pred_check_branch
          %283 = sbr.rel (%p281) target = $region28
        $region27: #{tpu_custom_call.1} parent=23 // pred_region
          %s284 = sand.u32 %s50, 1
          %s285 = scalar_lea.sflag [#allocation3], %s284
          %s286 = sand.u32 %s50, 1
          %s287 = smul.addr %s286, 16
          %s288 = scalar_lea.vmem [#allocation2], %s287
          %s289 = smul.u32 2, %s34
          %s291 = ssub.s32 256, 256
          %292 = vsyncadd %s285, %s291
          %s293 = smul.addr %s33, 2
          %s294 = sadd.s32 %s289, %s293
          %s295 = smul.addr %s294, 128
          %s296 = scalar_lea.hbm %s0, %s295
          %s297 = sshll.u32 %s288, 4
          %s298 = int_to_ptr.vmem [resolvable:$true] %s297
          %303 = dma.hbm_to_vmem [thread:$0]  %s296, 256, %s298, %s285, 128, 128, 8
        $region28: #{tpu_custom_call.1} parent=23 // pred_fallthru
          _
        // Predicated region
        $region29: #{tpu_custom_call.1} parent=23 // pred_check
          %p304 = pneg %p140
        $region30: #{tpu_custom_call.1} parent=23 // pred_check_branch
          %306 = sbr.rel (%p304) target = $region32
        $region31: #{tpu_custom_call.1} parent=23 // pred_region
          %s307 = sand.u32 %s26, 1
          %s308 = scalar_lea.sflag [#allocation9], %s307
          %s309 = sand.u32 %s130, 1
          %s310 = smul.addr %s309, 4
          %s311 = scalar_lea.vmem [#allocation8], %s310
          %s312 = smul.u32 2, %s34
          %s314 = ssub.s32 64, 64
          %315 = vsyncadd %s308, %s314
          %s316 = smul.addr %s33, 2
          %s317 = sadd.s32 %s312, %s316
          %s318 = smul.addr %s317, 32
          %s319 = scalar_lea.hbm %s3, %s318
          %s320 = sshll.u32 %s311, 4
          %s321 = int_to_ptr.vmem [resolvable:$true] %s320
          %326 = dma.hbm_to_vmem [thread:$0]  %s319, 64, %s321, %s308, 32, 32, 2
        $region32: #{tpu_custom_call.1} parent=23 // pred_fallthru
          _
        // Predicated region
        $region33: #{tpu_custom_call.1} parent=23 // pred_check
          %p327 = pneg %p168
        $region34: #{tpu_custom_call.1} parent=23 // pred_check_branch
          %329 = sbr.rel (%p327) target = $region36
        $region35: #{tpu_custom_call.1} parent=23 // pred_region
          %s330 = sand.u32 %s26, 1
          %s331 = scalar_lea.sflag [#allocation9], %s330
          %s332 = sand.u32 %s158, 1
          %s333 = smul.addr %s332, 16
          %s334 = scalar_lea.vmem [#allocation10], %s333
          %s335 = smul.u32 2, %s34
          %s337 = ssub.s32 256, 256
          %338 = vsyncadd %s331, %s337
          %s339 = smul.addr %s33, 2
          %s340 = sadd.s32 %s335, %s339
          %s341 = smul.addr %s340, 128
          %s342 = scalar_lea.hbm %s4, %s341
          %s343 = sshll.u32 %s334, 4
          %s344 = int_to_ptr.vmem [resolvable:$true] %s343
          %349 = dma.hbm_to_vmem [thread:$0]  %s342, 256, %s344, %s331, 128, 128, 8
        $region36: #{tpu_custom_call.1} parent=23 // pred_fallthru
          _
      $region24: #{tpu_custom_call.1} parent=5 // pred_fallthru
        _
      %p350 = scmp.le.s32.totalorder 1, %s26
      %p351 = scmp.lt.s32.totalorder %s26, 3
      %p352 = pnand %p350, %p351
      %p353 = pneg %p352
      // Predicated region
      $region37: #{tpu_custom_call.1} parent=5 // pred_check
        _
      $region38: #{tpu_custom_call.1} parent=5 // pred_check_branch
        %355 = sbr.rel (%p352) target = $region40
      $region39: #{tpu_custom_call.1} parent=5 // pred_region
        %s356 = ssub.s32 %s26, 1
        %s357 = sand.u32 %s53, 1
        %s358 = scalar_lea.sflag [#allocation3], %s357
        %s359 = sand.u32 %s53, 1
        %s360 = smul.addr %s359, 16
        %s361 = scalar_lea.vmem [#allocation2], %s360
        // Predicated region
        $region41: #{tpu_custom_call.1} parent=39 // pred_check
          %p362 = pneg %p66
        $region42: #{tpu_custom_call.1} parent=39 // pred_check_branch
          %364 = sbr.rel (%p362) target = $region44
        $region43: #{tpu_custom_call.1} parent=39 // pred_region
          %365 = dma.done %s358, 256
        $region44: #{tpu_custom_call.1} parent=39 // pred_fallthru
          _
        // Predicated region
        $region45: #{tpu_custom_call.1} parent=39 // pred_check
          %p366 = pneg %p92
        $region46: #{tpu_custom_call.1} parent=39 // pred_check_branch
          %368 = sbr.rel (%p366) target = $region48
        $region47: #{tpu_custom_call.1} parent=39 // pred_region
          %369 = dma.done [#allocation6], 256
        $region48: #{tpu_custom_call.1} parent=39 // pred_fallthru
          _
        // Predicated region
        $region49: #{tpu_custom_call.1} parent=39 // pred_check
          %p370 = pneg %p118
        $region50: #{tpu_custom_call.1} parent=39 // pred_check_branch
          %372 = sbr.rel (%p370) target = $region52
        $region51: #{tpu_custom_call.1} parent=39 // pred_region
          %373 = dma.done [#allocation6], 256
        $region52: #{tpu_custom_call.1} parent=39 // pred_fallthru
          _
        %s374 = sand.u32 %s31, 1
        %s375 = scalar_lea.sflag [#allocation9], %s374
        %s376 = sand.u32 %s133, 1
        %s377 = smul.addr %s376, 4
        %s378 = scalar_lea.vmem [#allocation8], %s377
        // Predicated region
        $region53: #{tpu_custom_call.1} parent=39 // pred_check
          %p379 = pneg %p146
        $region54: #{tpu_custom_call.1} parent=39 // pred_check_branch
          %381 = sbr.rel (%p379) target = $region56
        $region55: #{tpu_custom_call.1} parent=39 // pred_region
          %382 = dma.done %s375, 64
        $region56: #{tpu_custom_call.1} parent=39 // pred_fallthru
          _
        %s383 = sand.u32 %s31, 1
        %s384 = scalar_lea.sflag [#allocation9], %s383
        %s385 = sand.u32 %s161, 1
        %s386 = smul.addr %s385, 16
        %s387 = scalar_lea.vmem [#allocation10], %s386
        // Predicated region
        $region57: #{tpu_custom_call.1} parent=39 // pred_check
          %p388 = pneg %p174
        $region58: #{tpu_custom_call.1} parent=39 // pred_check_branch
          %390 = sbr.rel (%p388) target = $region60
        $region59: #{tpu_custom_call.1} parent=39 // pred_region
          %391 = dma.done %s384, 256
        $region60: #{tpu_custom_call.1} parent=39 // pred_fallthru
          _
        %s392 = sand.u32 %s53, 1
        %s393 = scalar_lea.sflag [#allocation3], %s392
        %s394 = sand.u32 %s53, 1
        %s395 = smul.addr %s394, 16
        %s396 = scalar_lea.vmem [#allocation2], %s395
        %p397 = pneg %p66
        %p398 = pneg %p63
        %p399 = pneg %p92
        %p400 = pneg %p89
        %p401 = pneg %p118
        %p402 = pneg %p115
        %s403 = sand.u32 %s31, 1
        %s404 = scalar_lea.sflag [#allocation9], %s403
        %s405 = sand.u32 %s133, 1
        %s406 = smul.addr %s405, 4
        %s407 = scalar_lea.vmem [#allocation8], %s406
        %p408 = pneg %p146
        %p409 = pneg %p143
        %s410 = sand.u32 %s31, 1
        %s411 = scalar_lea.sflag [#allocation9], %s410
        %s412 = sand.u32 %s161, 1
        %s413 = smul.addr %s412, 16
        %s414 = scalar_lea.vmem [#allocation10], %s413
        %p415 = pneg %p174
        %p416 = pneg %p171
        %p417 = pneg %p202
        %p418 = pneg %p199
        %s419 = sand.u32 %s189, 1
        %s420 = scalar_lea.sflag [#allocation4], %s419
        %s421 = sand.u32 %s189, 1
        %s422 = smul.addr %s421, 16
        %s423 = scalar_lea.vmem [#allocation11], %s422
        %p424 = pneg %p230
        %p425 = pneg %p227
        %s426 = sand.u32 %s217, 1
        %s427 = scalar_lea.sflag [#allocation13], %s426
        %s428 = sand.u32 %s217, 1
        %s429 = smul.addr %s428, 16
        %s430 = scalar_lea.vmem [#allocation12], %s429
        %s431 = smul.u32 2, %s36
        %s432 = smul.u32 2, %s36
        %s433 = smul.u32 2, %s36
        %s434 = smul.u32 2, %s36
        %s435 = smul.u32 2, %s36
        %v438 = vld [vmem:[%s361] sm:$0xff]
        %v439 = vld [vmem:[%s361 + $0x8] sm:$0xff]
        %v440 = vld [vmem:[#allocation5] sm:$0xff]
        %v441 = vld [vmem:[#allocation5 + $0x8] sm:$0xff]
        %v442 = vld [vmem:[#allocation7] sm:$0xff]
        %v443 = vld [vmem:[#allocation7 + $0x8] sm:$0xff]
        %vm444 = vcmask 261120
        %v446 = vsel %vm444, %v438, 0
        %v449 = vsel %vm444, %v439, 0
        %v452 = vsel %vm444, %v440, 0
        %v455 = vsel %vm444, %v441, 0
        %457 = vmatprep.subr.mxu0 0.0
        %458 = vmatpush1.xpose.msra.mxu0 0.0
        %459 = vmatprep.subr.mxu0 0.0
        %460 = vmatpush1.xpose.msra.mxu0 0.0
        %461 = vmatprep.subr.mxu0 0.0
        %462 = vmatpush1.xpose.msra.mxu0 0.0
        %463 = vmatprep.subr.mxu0 0.0
        %464 = vmatpush1.xpose.msra.mxu0 0.0
        %465 = vmatprep.subr.mxu0 0.0
        %466 = vmatpush1.xpose.msra.mxu0 0.0
        %467 = vmatprep.subr.mxu0 0.0
        %468 = vmatpush1.xpose.msra.mxu0 0.0
        %469 = vmatprep.subr.mxu0 0.0
        %470 = vmatpush1.xpose.msra.mxu0 0.0
        %471 = vmatprep.subr.mxu0 0.0
        %472 = vmatpush1.xpose.msra.mxu0 0.0
        %473 = vmatprep.subr.mxu0 0.0
        %474 = vmatpush1.xpose.msra.mxu0 0.0
        %475 = vmatprep.subr.mxu0 0.0
        %476 = vmatpush1.xpose.msra.mxu0 0.0
        %477 = vmatprep.subr.mxu0 0.0
        %478 = vmatpush1.xpose.msra.mxu0 0.0
        %479 = vmatprep.subr.mxu0 0.0
        %480 = vmatpush1.xpose.msra.mxu0 0.0
        %481 = vmatprep.subr.mxu0 0.0
        %482 = vmatpush1.xpose.msra.mxu0 0.0
        %483 = vmatprep.subr.mxu0 0.0
        %484 = vmatpush1.xpose.msra.mxu0 0.0
        %485 = vmatprep.subr.mxu0 0.0
        %486 = vmatpush1.xpose.msra.mxu0 %v455
        %487 = vmatprep.subr.mxu0 0.0
        %488 = vmatpush1.xpose.msra.mxu0 %v452
        %489 = vmatprep.subr.mxu0 0.0
        %490 = vmatpush2.xpose.msra.mxu0 0.0
        %491 = vmatprep.subr.mxu0 0.0
        %492 = vmatpush2.xpose.msra.mxu0 0.0
        %493 = vmatprep.subr.mxu0 0.0
        %494 = vmatpush2.xpose.msra.mxu0 0.0
        %495 = vmatprep.subr.mxu0 0.0
        %496 = vmatpush2.xpose.msra.mxu0 0.0
        %497 = vmatprep.subr.mxu0 0.0
        %498 = vmatpush2.xpose.msra.mxu0 0.0
        %499 = vmatprep.subr.mxu0 0.0
        %500 = vmatpush2.xpose.msra.mxu0 0.0
        %501 = vmatprep.subr.mxu0 0.0
        %502 = vmatpush2.xpose.msra.mxu0 0.0
        %503 = vmatprep.subr.mxu0 0.0
        %504 = vmatpush2.xpose.msra.mxu0 0.0
        %505 = vmatprep.subr.mxu0 0.0
        %506 = vmatpush2.xpose.msra.mxu0 0.0
        %507 = vmatprep.subr.mxu0 0.0
        %508 = vmatpush2.xpose.msra.mxu0 0.0
        %509 = vmatprep.subr.mxu0 0.0
        %510 = vmatpush2.xpose.msra.mxu0 0.0
        %511 = vmatprep.subr.mxu0 0.0
        %512 = vmatpush2.xpose.msra.mxu0 0.0
        %513 = vmatprep.subr.mxu0 0.0
        %514 = vmatpush2.xpose.msra.mxu0 0.0
        %515 = vmatprep.subr.mxu0 0.0
        %516 = vmatpush2.xpose.msra.mxu0 0.0
        %517 = vmatprep.subr.mxu0 0.0
        %518 = vmatpush2.xpose.msra.mxu0 0.0
        %519 = vmatprep.subr.mxu0 0.0
        %520 = vmatpush2.xpose.msra.mxu0 0.0
        %521 = vmatprep.mubr.f32.mxu0 0.0
        %522 = vmatmul.mubr.f32.gmra.mxu0 %v446
        %v523 = vpop.f32.mrf.mxu0
        %v524 = vadd.f32 0.0, %v523
        %v525 = vpop.f32.mrf.mxu0
        %526 = vmatprep.mubr.f32.mxu0 0.0
        %527 = vmatmul.mubr.f32.gmra.mxu0 %v449
        %v528 = vpop.f32.mrf.mxu0
        %v529 = vadd.f32 0.0, %v528
        %v530 = vpop.f32.mrf.mxu0
        %531 = vdwg.mxu0
        %v532 = vld [vmem:[%s387] sm:$0xff]
        %v533 = vld [vmem:[%s387 + $0x8] sm:$0xff]
        %v534 = vmul.f32 %v524, %v532
        %v535 = vmul.f32 %v529, %v533
        %v536 = vmul.f32 %v534, 0.17677669
        %v537 = vmul.f32 %v535, 0.17677669
        %v538 = vld [vmem:[%s378] sm:$0x3]
        %v539 = vld [vmem:[%s378 + $0x2] sm:$0x3]
        %vm540 = vnez %v538
        %vm541 = vnez %v539
        %v542 = vsel %vm540, 16843009, 0
        %v543 = vsel %vm541, 16843009, 0
        %v544 = vunpack.c.0.s8 %v542
        %v545 = vunpack.c.0.s8 %v543
        %vm546 = vcmp.ne.s32.totalorder %v544, 0
        %vm547 = vcmp.ne.s32.totalorder %v545, 0
        %v548 = vsel %vm546, -1e+30, %v536
        %v549 = vsel %vm547, -1e+30, %v537
        %vm550 = vcmask 130048
        %v551 = vsel %vm550, %v548, -inf
        %552 = vmax.xlane.f32.xlu0 %v551
        %v553 = vpop.xlane.xlu0 %552
        %v554 = vsel %vm550, %v549, -inf
        %555 = vmax.xlane.f32.xlu0 %v554
        %v556 = vpop.xlane.xlu0 %555
        %v557 = vsub.f32 %v548, %v553
        %v558 = vsub.f32 %v549, %v556
        %v559 = vmul.f32 %v557, 1.442695
        %v560 = vpow.pop %v559
        %v561 = vmul.f32 %v558, 1.442695
        %v562 = vpow.pop %v561
        %v563 = vsel %vm550, %v560, 0.0
        %564 = vadd.xlane.f32.xlu0 %v563
        %v565 = vpop.xlane.xlu0 %564
        %v566 = vsel %vm550, %v562, 0.0
        %567 = vadd.xlane.f32.xlu0 %v566
        %v568 = vpop.xlane.xlu0 %567
        %v569 = vrcp.pop %v565
        %v570 = vrcp.pop %v568
        %v571 = vmul.f32 %v560, %v569
        %v572 = vmul.f32 %v562, %v570
        %573 = vst.msk [vmem:[%s430] sm:$0xff] %vm550, %v571
        %574 = vst.msk [vmem:[%s430 + $0x8] sm:$0xff] %vm550, %v572
        %v576 = vsel %vm550, %v571, 0
        %v579 = vsel %vm550, %v572, 0
        %581 = vmatprep.subr.mxu0 0.0
        %582 = vmatpush1.msra.mxu0 0.0
        %583 = vmatprep.subr.mxu0 0.0
        %584 = vmatpush1.msra.mxu0 0.0
        %585 = vmatprep.subr.mxu0 0.0
        %586 = vmatpush1.msra.mxu0 0.0
        %587 = vmatprep.subr.mxu0 0.0
        %588 = vmatpush1.msra.mxu0 0.0
        %589 = vmatprep.subr.mxu0 0.0
        %590 = vmatpush1.msra.mxu0 0.0
        %591 = vmatprep.subr.mxu0 0.0
        %592 = vmatpush1.msra.mxu0 0.0
        %593 = vmatprep.subr.mxu0 0.0
        %594 = vmatpush1.msra.mxu0 0.0
        %595 = vmatprep.subr.mxu0 0.0
        %596 = vmatpush1.msra.mxu0 0.0
        %597 = vmatprep.subr.mxu0 0.0
        %598 = vmatpush1.msra.mxu0 0.0
        %599 = vmatprep.subr.mxu0 0.0
        %600 = vmatpush1.msra.mxu0 0.0
        %601 = vmatprep.subr.mxu0 0.0
        %602 = vmatpush1.msra.mxu0 0.0
        %603 = vmatprep.subr.mxu0 0.0
        %604 = vmatpush1.msra.mxu0 0.0
        %605 = vmatprep.subr.mxu0 0.0
        %606 = vmatpush1.msra.mxu0 0.0
        %607 = vmatprep.subr.mxu0 0.0
        %608 = vmatpush1.msra.mxu0 0.0
        %609 = vmatprep.subr.mxu0 0.0
        %610 = vmatpush1.msra.mxu0 %v443
        %611 = vmatprep.subr.mxu0 0.0
        %612 = vmatpush1.msra.mxu0 %v442
        %613 = vmatprep.subr.mxu0 0.0
        %614 = vmatpush2.msra.mxu0 0.0
        %615 = vmatprep.subr.mxu0 0.0
        %616 = vmatpush2.msra.mxu0 0.0
        %617 = vmatprep.subr.mxu0 0.0
        %618 = vmatpush2.msra.mxu0 0.0
        %619 = vmatprep.subr.mxu0 0.0
        %620 = vmatpush2.msra.mxu0 0.0
        %621 = vmatprep.subr.mxu0 0.0
        %622 = vmatpush2.msra.mxu0 0.0
        %623 = vmatprep.subr.mxu0 0.0
        %624 = vmatpush2.msra.mxu0 0.0
        %625 = vmatprep.subr.mxu0 0.0
        %626 = vmatpush2.msra.mxu0 0.0
        %627 = vmatprep.subr.mxu0 0.0
        %628 = vmatpush2.msra.mxu0 0.0
        %629 = vmatprep.subr.mxu0 0.0
        %630 = vmatpush2.msra.mxu0 0.0
        %631 = vmatprep.subr.mxu0 0.0
        %632 = vmatpush2.msra.mxu0 0.0
        %633 = vmatprep.subr.mxu0 0.0
        %634 = vmatpush2.msra.mxu0 0.0
        %635 = vmatprep.subr.mxu0 0.0
        %636 = vmatpush2.msra.mxu0 0.0
        %637 = vmatprep.subr.mxu0 0.0
        %638 = vmatpush2.msra.mxu0 0.0
        %639 = vmatprep.subr.mxu0 0.0
        %640 = vmatpush2.msra.mxu0 0.0
        %641 = vmatprep.subr.mxu0 0.0
        %642 = vmatpush2.msra.mxu0 0.0
        %643 = vmatprep.subr.mxu0 0.0
        %644 = vmatpush2.msra.mxu0 0.0
        %645 = vmatprep.mubr.f32.mxu0 0.0
        %646 = vmatmul.mubr.f32.gmra.mxu0 %v576
        %v647 = vpop.f32.mrf.mxu0
        %v648 = vadd.f32 0.0, %v647
        %v649 = vpop.f32.mrf.mxu0
        %650 = vmatprep.mubr.f32.mxu0 0.0
        %651 = vmatmul.mubr.f32.gmra.mxu0 %v579
        %v652 = vpop.f32.mrf.mxu0
        %v653 = vadd.f32 0.0, %v652
        %v654 = vpop.f32.mrf.mxu0
        %655 = vdwg.mxu0
        %656 = vst.msk [vmem:[%s423] sm:$0xff] %vm444, %v648
        %657 = vst.msk [vmem:[%s423 + $0x8] sm:$0xff] %vm444, %v653
        %s658 = sand.u32 %s189, 1
        %s659 = scalar_lea.sflag [#allocation4], %s658
        %s660 = sand.u32 %s189, 1
        %s661 = smul.addr %s660, 16
        %s662 = scalar_lea.vmem [#allocation11], %s661
        %s663 = sand.u32 %s217, 1
        %s664 = scalar_lea.sflag [#allocation13], %s663
        %s665 = sand.u32 %s217, 1
        %s666 = smul.addr %s665, 16
        %s667 = scalar_lea.vmem [#allocation12], %s666
        // Predicated region
        $region61: #{tpu_custom_call.1} parent=39 // pred_check
          %p668 = pneg %p199
        $region62: #{tpu_custom_call.1} parent=39 // pred_check_branch
          %670 = sbr.rel (%p668) target = $region64
        $region63: #{tpu_custom_call.1} parent=39 // pred_region
          %s671 = smul.u32 2, %s36
          %s673 = ssub.s32 256, 256
          %674 = vsyncadd %s659, %s673
          %s675 = smul.addr %s35, 2
          %s676 = sadd.s32 %s671, %s675
          %s677 = smul.addr %s676, 128
          %s678 = scalar_lea.hbm %s5, %s677
          %s679 = sshll.u32 %s662, 4
          %s680 = int_to_ptr.vmem [resolvable:$true] %s679
          %685 = dma.vmem_to_hbm [thread:$0]  %s680, 256, %s678, %s659, 128, 128, 8
        $region64: #{tpu_custom_call.1} parent=39 // pred_fallthru
          _
        // Predicated region
        $region65: #{tpu_custom_call.1} parent=39 // pred_check
          %p686 = pneg %p227
        $region66: #{tpu_custom_call.1} parent=39 // pred_check_branch
          %688 = sbr.rel (%p686) target = $region68
        $region67: #{tpu_custom_call.1} parent=39 // pred_region
          %s689 = smul.u32 2, %s36
          %s691 = ssub.s32 256, 256
          %692 = vsyncadd %s664, %s691
          %s693 = smul.addr %s35, 2
          %s694 = sadd.s32 %s689, %s693
          %s695 = smul.addr %s694, 128
          %s696 = scalar_lea.hbm %s6, %s695
          %s697 = sshll.u32 %s667, 4
          %s698 = int_to_ptr.vmem [resolvable:$true] %s697
          %703 = dma.vmem_to_hbm [thread:$0]  %s698, 256, %s696, %s664, 128, 128, 8
        $region68: #{tpu_custom_call.1} parent=39 // pred_fallthru
          _
      $region40: #{tpu_custom_call.1} parent=5 // pred_fallthru
        _
      %p704 = scmp.le.s32.totalorder 2, %s26
      // Predicated region
      $region69: #{tpu_custom_call.1} parent=5 // pred_check
        %p705 = pneg %p704
      $region70: #{tpu_custom_call.1} parent=5 // pred_check_branch
        %707 = sbr.rel (%p705) target = $region72
      $region71: #{tpu_custom_call.1} parent=5 // pred_region
        %s708 = ssub.s32 %s26, 2
        // Predicated region
        $region73: #{tpu_custom_call.1} parent=71 // pred_check
          %p709 = pneg %p205
        $region74: #{tpu_custom_call.1} parent=71 // pred_check_branch
          %711 = sbr.rel (%p709) target = $region76
        $region75: #{tpu_custom_call.1} parent=71 // pred_region
          %s712 = sand.u32 %s190, 1
          %s713 = scalar_lea.sflag [#allocation4], %s712
          %s714 = sand.u32 %s190, 1
          %s715 = smul.addr %s714, 16
          %s716 = scalar_lea.vmem [#allocation11], %s715
          %717 = dma.done %s713, 256
        $region76: #{tpu_custom_call.1} parent=71 // pred_fallthru
          _
        // Predicated region
        $region77: #{tpu_custom_call.1} parent=71 // pred_check
          %p718 = pneg %p233
        $region78: #{tpu_custom_call.1} parent=71 // pred_check_branch
          %720 = sbr.rel (%p718) target = $region80
        $region79: #{tpu_custom_call.1} parent=71 // pred_region
          %s721 = sand.u32 %s218, 1
          %s722 = scalar_lea.sflag [#allocation13], %s721
          %s723 = sand.u32 %s218, 1
          %s724 = smul.addr %s723, 16
          %s725 = scalar_lea.vmem [#allocation12], %s724
          %726 = dma.done %s722, 256
        $region80: #{tpu_custom_call.1} parent=71 // pred_fallthru
          _
      $region72: #{tpu_custom_call.1} parent=5 // pred_fallthru
        _
    $region6: #{tpu_custom_call.1} parent=1 // loop_footer
      %s30 = sadd.s32 1, %s26
    $region7: #{tpu_custom_call.1} parent=1 // loop_footer_branch
      %25 = sbr.rel target = $region3
    $region8: #{tpu_custom_call.1} parent=1 // loop_exit
      _
    %727 = vsyncpa [#allocation3], 1
    %s728 = scalar_lea.sflag [#allocation3], 1
    %729 = vsyncpa %s728, 1
    %730 = vsyncpa [#allocation6], 1
    %731 = vsyncpa [#allocation9], 1
    %s732 = scalar_lea.sflag [#allocation9], 1
    %733 = vsyncpa %s732, 1
    %734 = vsyncpa [#allocation4], 1
    %s735 = scalar_lea.sflag [#allocation4], 1
    %736 = vsyncpa %s735, 1
    %737 = vsyncpa [#allocation13], 1
    %s738 = scalar_lea.sflag [#allocation13], 1
    %739 = vsyncpa %s738, 1

// kernel: tpu_custom_call.1
$region0: #{tpu_custom_call.1}
  #allocation0 [shape = 'u32[]', space=smem, size = 0x4, offset = 0x4, fixed_abs, tag = 'smem constant byte address 0x4 - core index']
  #allocation1 [shape = 'u32[144,128]{1,0:T(1,128)}', space=vmem, size = 0x12000, scoped, tag = 'internal scratch']
  %s0 = inlined_call_operand.hbm [shape: f32[2,16,32], index: 0, kind: input, shape index: {}]
  %s1 = inlined_call_operand.hbm [shape: f32[2,16,32], index: 1, kind: input, shape index: {}]
  %s2 = inlined_call_operand.hbm [shape: f32[2,16,32], index: 2, kind: input, shape index: {}]
  %s3 = inlined_call_operand.hbm [shape: s8[2,16,16], index: 3, kind: input, shape index: {}]
  %s4 = inlined_call_operand.hbm [shape: f32[2,16,16], index: 4, kind: input, shape index: {}]
  %s5 = inlined_call_operand.hbm [shape: f32[2,16,32], index: 5, kind: output, shape index: {0}]
  %s6 = inlined_call_operand.hbm [shape: f32[2,16,16], index: 6, kind: output, shape index: {1}]
  %7 = xla_tuple %s5, %s6
  %s8 = sld [smem:[#allocation0]]
  $region81: #{tpu_custom_call.1} parent=0
    _
  %s10 = ssub.s32 1, %s8
  %s11 = scalar_select 0, %s10, %s8
  $region1: #{tpu_custom_call.1} parent=0
    #allocation2 [shape = 'u8[16384]{0}', space=vmem, size = 0x4000, scoped, tag = 'input window, operand 0']
    #allocation3 [shape = 's32[2]{0}', space=sflag, size = 0x8, scoped, tag = 'scoped memory for tpu_custom_call.1']
    #allocation4 [shape = 's32[2]{0}', space=sflag, size = 0x8, scoped, tag = 'scoped memory for tpu_custom_call.1']
    #allocation5 [shape = 'u8[16384]{0}', space=vmem, size = 0x4000, scoped, tag = 'input window, operand 1']
    #allocation6 [shape = 's32[2]{0}', space=sflag, size = 0x8, scoped, tag = 'scoped memory for tpu_custom_call.1']
    #allocation7 [shape = 'u8[16384]{0}', space=vmem, size = 0x4000, scoped, tag = 'input window, operand 2']
    #allocation8 [shape = 'u8[4096]{0}', space=vmem, size = 0x1000, scoped, tag = 'input window, operand 3']
    #allocation9 [shape = 's32[2]{0}', space=sflag, size = 0x8, scoped, tag = 'scoped memory for tpu_custom_call.1']
    #allocation10 [shape = 'u8[16384]{0}', space=vmem, size = 0x4000, scoped, tag = 'input window, operand 4']
    #allocation11 [shape = 'u8[16384]{0}', space=vmem, size = 0x4000, scoped, tag = 'output window, operand 0']
    #allocation12 [shape = 'u8[16384]{0}', space=vmem, size = 0x4000, scoped, tag = 'output window, operand 1']
    #allocation13 [shape = 's32[2]{0}', space=sflag, size = 0x8, scoped, tag = 'scoped memory for tpu_custom_call.1']
    %12 = vsyncpa [#allocation3], 0
    %s13 = scalar_lea.sflag [#allocation3], 1
    %14 = vsyncpa %s13, 0
    %15 = vsyncpa [#allocation6], 0
    %s16 = scalar_lea.sflag [#allocation6], 1
    %17 = vsyncpa %s16, 0
    %18 = vsyncpa [#allocation9], 0
    %s19 = scalar_lea.sflag [#allocation9], 1
    %20 = vsyncpa %s19, 0
    %21 = vsyncpa [#allocation4], 0
    %s22 = scalar_lea.sflag [#allocation4], 1
    %23 = vsyncpa %s22, 0
    %24 = vsyncpa [#allocation13], 0
    %s25 = scalar_lea.sflag [#allocation13], 1
    %26 = vsyncpa %s25, 0
    loop: start=0, step=1, limit=4
    $region2: #{tpu_custom_call.1} parent=1 // loop_pre_header
      _
    $region3: #{tpu_custom_call.1} parent=1 // loop_header
      %s28 = sphi 0, %s32
      %p29 = scmp.ge.s32.totalorder %s28, 4
      %s35 = sphi 0, %s47
      %s36 = sphi 0, %s43
      %s37 = sphi 0, %s35
      %s38 = sphi 0, %s36
      %s39 = sphi 0, %s37
      %s40 = sphi 0, %s38
      %s52 = sphi 0, %s54
      %s55 = sphi 0, %s52
      %s56 = sphi 0, %s55
      %s72 = sphi 0, %s56
      %s78 = sphi 0, %s80
      %s81 = sphi 0, %s78
      %s82 = sphi 0, %s81
      %s98 = sphi 0, %s82
      %s104 = sphi 0, %s106
      %s107 = sphi 0, %s104
      %s108 = sphi 0, %s107
      %s124 = sphi 0, %s108
      %s132 = sphi 0, %s134
      %s135 = sphi 0, %s132
      %s136 = sphi 0, %s135
      %s152 = sphi 0, %s136
      %s160 = sphi 0, %s162
      %s163 = sphi 0, %s160
      %s164 = sphi 0, %s163
      %s180 = sphi 0, %s164
      %s188 = sphi 0, %s190
      %s191 = sphi 0, %s188
      %s192 = sphi 0, %s191
      %s208 = sphi 0, %s192
      %s216 = sphi 0, %s218
      %s219 = sphi 0, %s216
      %s220 = sphi 0, %s219
      %s236 = sphi 0, %s220
    $region4: #{tpu_custom_call.1} parent=1 // loop_header_branch
      %31 = sbr.rel (%p29) target = $region8
    $region5: #{tpu_custom_call.1} parent=1 // loop_body
      %s33 = ssub.s32 %s28, 1
      %s34 = ssub.s32 %s28, 2
      %s41 = sadd.s32 1, %s36
      %p42 = scmp.ge.s32.totalorder %s41, 1
      %s43 = scalar_select %p42, 0, %s41
      %s44 = sadd.s32 1, %s35
      %s45 = scalar_select %p42, %s44, %s35
      %p46 = scmp.ge.s32.totalorder %s45, 2
      %s47 = scalar_select %p46, 0, %s45
      %s48 = ssub.s32 %s35, %s47
      %s49 = ssub.s32 %s36, %s43
      %s50 = sor.u32 %s48, %s49
      %p51 = scmp.eq.s32.totalorder %s50, 0
      %s53 = sadd.s32 %s52, 1
      %s54 = scalar_select %p51, %s52, %s53
      %p57 = pneg %p51
      %p58 = scmp.eq.s32.totalorder %s28, 1
      %p59 = por %p57, %p58
      %p60 = scmp.ne.s32.totalorder %s52, %s55
      %p61 = scmp.eq.s32.totalorder %s28, 0
      %p62 = por %p60, %p61
      %p63 = scmp.ne.s32.totalorder %s52, %s55
      %p64 = scmp.eq.s32.totalorder %s33, 1
      %p65 = por %p63, %p64
      %p66 = scmp.ne.s32.totalorder %s55, %s56
      %p67 = scmp.eq.s32.totalorder %s33, 0
      %p68 = por %p66, %p67
      %p69 = scmp.ne.s32.totalorder %s55, %s56
      %p70 = scmp.eq.s32.totalorder %s34, 1
      %p71 = por %p69, %p70
      %p73 = scmp.ne.s32.totalorder %s56, %s72
      %p74 = scmp.eq.s32.totalorder %s34, 0
      %p75 = por %p73, %p74
      %s76 = ssub.s32 %s35, %s47
      %p77 = scmp.eq.s32.totalorder %s76, 0
      %s79 = sadd.s32 %s78, 1
      %s80 = scalar_select %p77, %s78, %s79
      %p83 = pneg %p77
      %p84 = scmp.eq.s32.totalorder %s28, 1
      %p85 = por %p83, %p84
      %p86 = scmp.ne.s32.totalorder %s78, %s81
      %p87 = scmp.eq.s32.totalorder %s28, 0
      %p88 = por %p86, %p87
      %p89 = scmp.ne.s32.totalorder %s78, %s81
      %p90 = scmp.eq.s32.totalorder %s33, 1
      %p91 = por %p89, %p90
      %p92 = scmp.ne.s32.totalorder %s81, %s82
      %p93 = scmp.eq.s32.totalorder %s33, 0
      %p94 = por %p92, %p93
      %p95 = scmp.ne.s32.totalorder %s81, %s82
      %p96 = scmp.eq.s32.totalorder %s34, 1
      %p97 = por %p95, %p96
      %p99 = scmp.ne.s32.totalorder %s82, %s98
      %p100 = scmp.eq.s32.totalorder %s34, 0
      %p101 = por %p99, %p100
      %s102 = ssub.s32 %s35, %s47
      %p103 = scmp.eq.s32.totalorder %s102, 0
      %s105 = sadd.s32 %s104, 1
      %s106 = scalar_select %p103, %s104, %s105
      %p109 = pneg %p103
      %p110 = scmp.eq.s32.totalorder %s28, 1
      %p111 = por %p109, %p110
      %p112 = scmp.ne.s32.totalorder %s104, %s107
      %p113 = scmp.eq.s32.totalorder %s28, 0
      %p114 = por %p112, %p113
      %p115 = scmp.ne.s32.totalorder %s104, %s107
      %p116 = scmp.eq.s32.totalorder %s33, 1
      %p117 = por %p115, %p116
      %p118 = scmp.ne.s32.totalorder %s107, %s108
      %p119 = scmp.eq.s32.totalorder %s33, 0
      %p120 = por %p118, %p119
      %p121 = scmp.ne.s32.totalorder %s107, %s108
      %p122 = scmp.eq.s32.totalorder %s34, 1
      %p123 = por %p121, %p122
      %p125 = scmp.ne.s32.totalorder %s108, %s124
      %p126 = scmp.eq.s32.totalorder %s34, 0
      %p127 = por %p125, %p126
      %s128 = ssub.s32 %s35, %s47
      %s129 = ssub.s32 %s36, %s43
      %s130 = sor.u32 %s128, %s129
      %p131 = scmp.eq.s32.totalorder %s130, 0
      %s133 = sadd.s32 %s132, 1
      %s134 = scalar_select %p131, %s132, %s133
      %p137 = pneg %p131
      %p138 = scmp.eq.s32.totalorder %s28, 1
      %p139 = por %p137, %p138
      %p140 = scmp.ne.s32.totalorder %s132, %s135
      %p141 = scmp.eq.s32.totalorder %s28, 0
      %p142 = por %p140, %p141
      %p143 = scmp.ne.s32.totalorder %s132, %s135
      %p144 = scmp.eq.s32.totalorder %s33, 1
      %p145 = por %p143, %p144
      %p146 = scmp.ne.s32.totalorder %s135, %s136
      %p147 = scmp.eq.s32.totalorder %s33, 0
      %p148 = por %p146, %p147
      %p149 = scmp.ne.s32.totalorder %s135, %s136
      %p150 = scmp.eq.s32.totalorder %s34, 1
      %p151 = por %p149, %p150
      %p153 = scmp.ne.s32.totalorder %s136, %s152
      %p154 = scmp.eq.s32.totalorder %s34, 0
      %p155 = por %p153, %p154
      %s156 = ssub.s32 %s35, %s47
      %s157 = ssub.s32 %s36, %s43
      %s158 = sor.u32 %s156, %s157
      %p159 = scmp.eq.s32.totalorder %s158, 0
      %s161 = sadd.s32 %s160, 1
      %s162 = scalar_select %p159, %s160, %s161
      %p165 = pneg %p159
      %p166 = scmp.eq.s32.totalorder %s28, 1
      %p167 = por %p165, %p166
      %p168 = scmp.ne.s32.totalorder %s160, %s163
      %p169 = scmp.eq.s32.totalorder %s28, 0
      %p170 = por %p168, %p169
      %p171 = scmp.ne.s32.totalorder %s160, %s163
      %p172 = scmp.eq.s32.totalorder %s33, 1
      %p173 = por %p171, %p172
      %p174 = scmp.ne.s32.totalorder %s163, %s164
      %p175 = scmp.eq.s32.totalorder %s33, 0
      %p176 = por %p174, %p175
      %p177 = scmp.ne.s32.totalorder %s163, %s164
      %p178 = scmp.eq.s32.totalorder %s34, 1
      %p179 = por %p177, %p178
      %p181 = scmp.ne.s32.totalorder %s164, %s180
      %p182 = scmp.eq.s32.totalorder %s34, 0
      %p183 = por %p181, %p182
      %s184 = ssub.s32 %s35, %s47
      %s185 = ssub.s32 %s36, %s43
      %s186 = sor.u32 %s184, %s185
      %p187 = scmp.eq.s32.totalorder %s186, 0
      %s189 = sadd.s32 %s188, 1
      %s190 = scalar_select %p187, %s188, %s189
      %p193 = pneg %p187
      %p194 = scmp.eq.s32.totalorder %s28, 1
      %p195 = por %p193, %p194
      %p196 = scmp.ne.s32.totalorder %s188, %s191
      %p197 = scmp.eq.s32.totalorder %s28, 0
      %p198 = por %p196, %p197
      %p199 = scmp.ne.s32.totalorder %s188, %s191
      %p200 = scmp.eq.s32.totalorder %s33, 1
      %p201 = por %p199, %p200
      %p202 = scmp.ne.s32.totalorder %s191, %s192
      %p203 = scmp.eq.s32.totalorder %s33, 0
      %p204 = por %p202, %p203
      %p205 = scmp.ne.s32.totalorder %s191, %s192
      %p206 = scmp.eq.s32.totalorder %s34, 1
      %p207 = por %p205, %p206
      %p209 = scmp.ne.s32.totalorder %s192, %s208
      %p210 = scmp.eq.s32.totalorder %s34, 0
      %p211 = por %p209, %p210
      %s212 = ssub.s32 %s35, %s47
      %s213 = ssub.s32 %s36, %s43
      %s214 = sor.u32 %s212, %s213
      %p215 = scmp.eq.s32.totalorder %s214, 0
      %s217 = sadd.s32 %s216, 1
      %s218 = scalar_select %p215, %s216, %s217
      %p221 = pneg %p215
      %p222 = scmp.eq.s32.totalorder %s28, 1
      %p223 = por %p221, %p222
      %p224 = scmp.ne.s32.totalorder %s216, %s219
      %p225 = scmp.eq.s32.totalorder %s28, 0
      %p226 = por %p224, %p225
      %p227 = scmp.ne.s32.totalorder %s216, %s219
      %p228 = scmp.eq.s32.totalorder %s33, 1
      %p229 = por %p227, %p228
      %p230 = scmp.ne.s32.totalorder %s219, %s220
      %p231 = scmp.eq.s32.totalorder %s33, 0
      %p232 = por %p230, %p231
      %p233 = scmp.ne.s32.totalorder %s219, %s220
      %p234 = scmp.eq.s32.totalorder %s34, 1
      %p235 = por %p233, %p234
      %p237 = scmp.ne.s32.totalorder %s220, %s236
      %p238 = scmp.eq.s32.totalorder %s34, 0
      %p239 = por %p237, %p238
      %p240 = scmp.le.s32.totalorder 1, %s28
      %p241 = scmp.lt.s32.totalorder %s28, 3
      %p242 = pnand %p240, %p241
      %p243 = pneg %p242
      // Predicated region
      $region9: #{tpu_custom_call.1} parent=5 // pred_check
        _
      $region10: #{tpu_custom_call.1} parent=5 // pred_check_branch
        %245 = sbr.rel (%p242) target = $region12
      $region11: #{tpu_custom_call.1} parent=5 // pred_region
        %s246 = ssub.s32 %s28, 1
      $region12: #{tpu_custom_call.1} parent=5 // pred_fallthru
        _
      %p247 = scmp.lt.s32.totalorder %s28, 2
      // Predicated region
      $region13: #{tpu_custom_call.1} parent=5 // pred_check
        %p248 = pneg %p247
      $region14: #{tpu_custom_call.1} parent=5 // pred_check_branch
        %250 = sbr.rel (%p248) target = $region16
      $region15: #{tpu_custom_call.1} parent=5 // pred_region
        // Predicated region
        $region17: #{tpu_custom_call.1} parent=15 // pred_check
          %p251 = pneg %p62
        $region18: #{tpu_custom_call.1} parent=15 // pred_check_branch
          %253 = sbr.rel (%p251) target = $region20
        $region19: #{tpu_custom_call.1} parent=15 // pred_region
          %s254 = sand.u32 %s52, 1
          %s255 = scalar_lea.sflag [#allocation3], %s254
          %s256 = sand.u32 %s52, 1
          %s257 = smul.addr %s256, 16
          %s258 = scalar_lea.vmem [#allocation2], %s257
          %s259 = smul.u32 2, %s36
          %s261 = ssub.s32 256, 256
          %262 = vsyncadd %s255, %s261
          %s263 = smul.addr %s35, 2
          %s264 = sadd.s32 %s259, %s263
          %s265 = smul.addr %s264, 128
          %s266 = scalar_lea.hbm %s0, %s265
          %s267 = sshll.u32 %s258, 4
          %s268 = int_to_ptr.vmem [resolvable:$true] %s267
          %273 = dma.hbm_to_vmem [thread:$0]  %s266, 256, %s268, %s255, 128, 128, 8
        $region20: #{tpu_custom_call.1} parent=15 // pred_fallthru
          _
        // Predicated region
        $region21: #{tpu_custom_call.1} parent=15 // pred_check
          %p274 = pneg %p88
        $region22: #{tpu_custom_call.1} parent=15 // pred_check_branch
          %276 = sbr.rel (%p274) target = $region24
        $region23: #{tpu_custom_call.1} parent=15 // pred_region
          %s277 = sand.u32 %s28, 1
          %s278 = scalar_lea.sflag [#allocation6], %s277
          %s279 = sand.u32 %s78, 1
          %s280 = smul.addr %s279, 16
          %s281 = scalar_lea.vmem [#allocation5], %s280
          %s283 = ssub.s32 256, 256
          %284 = vsyncadd %s278, %s283
          %s285 = smul.addr %s35, 2
          %s286 = smul.addr %s285, 128
          %s287 = scalar_lea.hbm %s1, %s286
          %s288 = sshll.u32 %s281, 4
          %s289 = int_to_ptr.vmem [resolvable:$true] %s288
          %294 = dma.hbm_to_vmem [thread:$0]  %s287, 256, %s289, %s278, 128, 128, 8
        $region24: #{tpu_custom_call.1} parent=15 // pred_fallthru
          _
        // Predicated region
        $region25: #{tpu_custom_call.1} parent=15 // pred_check
          %p295 = pneg %p114
        $region26: #{tpu_custom_call.1} parent=15 // pred_check_branch
          %297 = sbr.rel (%p295) target = $region28
        $region27: #{tpu_custom_call.1} parent=15 // pred_region
          %s298 = sand.u32 %s28, 1
          %s299 = scalar_lea.sflag [#allocation6], %s298
          %s300 = sand.u32 %s104, 1
          %s301 = smul.addr %s300, 16
          %s302 = scalar_lea.vmem [#allocation7], %s301
          %s304 = ssub.s32 256, 256
          %305 = vsyncadd %s299, %s304
          %s306 = smul.addr %s35, 2
          %s307 = smul.addr %s306, 128
          %s308 = scalar_lea.hbm %s2, %s307
          %s309 = sshll.u32 %s302, 4
          %s310 = int_to_ptr.vmem [resolvable:$true] %s309
          %315 = dma.hbm_to_vmem [thread:$0]  %s308, 256, %s310, %s299, 128, 128, 8
        $region28: #{tpu_custom_call.1} parent=15 // pred_fallthru
          _
        // Predicated region
        $region29: #{tpu_custom_call.1} parent=15 // pred_check
          %p316 = pneg %p142
        $region30: #{tpu_custom_call.1} parent=15 // pred_check_branch
          %318 = sbr.rel (%p316) target = $region32
        $region31: #{tpu_custom_call.1} parent=15 // pred_region
          %s319 = sand.u32 %s28, 1
          %s320 = scalar_lea.sflag [#allocation9], %s319
          %s321 = sand.u32 %s132, 1
          %s322 = smul.addr %s321, 4
          %s323 = scalar_lea.vmem [#allocation8], %s322
          %s324 = smul.u32 2, %s36
          %s326 = ssub.s32 64, 64
          %327 = vsyncadd %s320, %s326
          %s328 = smul.addr %s35, 2
          %s329 = sadd.s32 %s324, %s328
          %s330 = smul.addr %s329, 32
          %s331 = scalar_lea.hbm %s3, %s330
          %s332 = sshll.u32 %s323, 4
          %s333 = int_to_ptr.vmem [resolvable:$true] %s332
          %338 = dma.hbm_to_vmem [thread:$0]  %s331, 64, %s333, %s320, 32, 32, 2
        $region32: #{tpu_custom_call.1} parent=15 // pred_fallthru
          _
        // Predicated region
        $region33: #{tpu_custom_call.1} parent=15 // pred_check
          %p339 = pneg %p170
        $region34: #{tpu_custom_call.1} parent=15 // pred_check_branch
          %341 = sbr.rel (%p339) target = $region36
        $region35: #{tpu_custom_call.1} parent=15 // pred_region
          %s342 = sand.u32 %s28, 1
          %s343 = scalar_lea.sflag [#allocation9], %s342
          %s344 = sand.u32 %s160, 1
          %s345 = smul.addr %s344, 16
          %s346 = scalar_lea.vmem [#allocation10], %s345
          %s347 = smul.u32 2, %s36
          %s349 = ssub.s32 256, 256
          %350 = vsyncadd %s343, %s349
          %s351 = smul.addr %s35, 2
          %s352 = sadd.s32 %s347, %s351
          %s353 = smul.addr %s352, 128
          %s354 = scalar_lea.hbm %s4, %s353
          %s355 = sshll.u32 %s346, 4
          %s356 = int_to_ptr.vmem [resolvable:$true] %s355
          %361 = dma.hbm_to_vmem [thread:$0]  %s354, 256, %s356, %s343, 128, 128, 8
        $region36: #{tpu_custom_call.1} parent=15 // pred_fallthru
          _
      $region16: #{tpu_custom_call.1} parent=5 // pred_fallthru
        _
      %p362 = scmp.le.s32.totalorder 1, %s28
      %p363 = scmp.lt.s32.totalorder %s28, 3
      %p364 = pnand %p362, %p363
      %p365 = pneg %p364
      // Predicated region
      $region37: #{tpu_custom_call.1} parent=5 // pred_check
        _
      $region38: #{tpu_custom_call.1} parent=5 // pred_check_branch
        %367 = sbr.rel (%p364) target = $region40
      $region39: #{tpu_custom_call.1} parent=5 // pred_region
        %s368 = ssub.s32 %s28, 1
        %s369 = sand.u32 %s55, 1
        %s370 = scalar_lea.sflag [#allocation3], %s369
        %s371 = sand.u32 %s55, 1
        %s372 = smul.addr %s371, 16
        %s373 = scalar_lea.vmem [#allocation2], %s372
        // Predicated region
        $region41: #{tpu_custom_call.1} parent=39 // pred_check
          %p374 = pneg %p68
        $region42: #{tpu_custom_call.1} parent=39 // pred_check_branch
          %376 = sbr.rel (%p374) target = $region44
        $region43: #{tpu_custom_call.1} parent=39 // pred_region
          %377 = dma.done %s370, 256
        $region44: #{tpu_custom_call.1} parent=39 // pred_fallthru
          _
        %s378 = sand.u32 %s33, 1
        %s379 = scalar_lea.sflag [#allocation6], %s378
        %s380 = sand.u32 %s81, 1
        %s381 = smul.addr %s380, 16
        %s382 = scalar_lea.vmem [#allocation5], %s381
        // Predicated region
        $region45: #{tpu_custom_call.1} parent=39 // pred_check
          %p383 = pneg %p94
        $region46: #{tpu_custom_call.1} parent=39 // pred_check_branch
          %385 = sbr.rel (%p383) target = $region48
        $region47: #{tpu_custom_call.1} parent=39 // pred_region
          %386 = dma.done %s379, 256
        $region48: #{tpu_custom_call.1} parent=39 // pred_fallthru
          _
        %s387 = sand.u32 %s33, 1
        %s388 = scalar_lea.sflag [#allocation6], %s387
        %s389 = sand.u32 %s107, 1
        %s390 = smul.addr %s389, 16
        %s391 = scalar_lea.vmem [#allocation7], %s390
        // Predicated region
        $region49: #{tpu_custom_call.1} parent=39 // pred_check
          %p392 = pneg %p120
        $region50: #{tpu_custom_call.1} parent=39 // pred_check_branch
          %394 = sbr.rel (%p392) target = $region52
        $region51: #{tpu_custom_call.1} parent=39 // pred_region
          %395 = dma.done %s388, 256
        $region52: #{tpu_custom_call.1} parent=39 // pred_fallthru
          _
        %s396 = sand.u32 %s33, 1
        %s397 = scalar_lea.sflag [#allocation9], %s396
        %s398 = sand.u32 %s135, 1
        %s399 = smul.addr %s398, 4
        %s400 = scalar_lea.vmem [#allocation8], %s399
        // Predicated region
        $region53: #{tpu_custom_call.1} parent=39 // pred_check
          %p401 = pneg %p148
        $region54: #{tpu_custom_call.1} parent=39 // pred_check_branch
          %403 = sbr.rel (%p401) target = $region56
        $region55: #{tpu_custom_call.1} parent=39 // pred_region
          %404 = dma.done %s397, 64
        $region56: #{tpu_custom_call.1} parent=39 // pred_fallthru
          _
        %s405 = sand.u32 %s33, 1
        %s406 = scalar_lea.sflag [#allocation9], %s405
        %s407 = sand.u32 %s163, 1
        %s408 = smul.addr %s407, 16
        %s409 = scalar_lea.vmem [#allocation10], %s408
        // Predicated region
        $region57: #{tpu_custom_call.1} parent=39 // pred_check
          %p410 = pneg %p176
        $region58: #{tpu_custom_call.1} parent=39 // pred_check_branch
          %412 = sbr.rel (%p410) target = $region60
        $region59: #{tpu_custom_call.1} parent=39 // pred_region
          %413 = dma.done %s406, 256
        $region60: #{tpu_custom_call.1} parent=39 // pred_fallthru
          _
        %s414 = sand.u32 %s55, 1
        %s415 = scalar_lea.sflag [#allocation3], %s414
        %s416 = sand.u32 %s55, 1
        %s417 = smul.addr %s416, 16
        %s418 = scalar_lea.vmem [#allocation2], %s417
        %p419 = pneg %p68
        %p420 = pneg %p65
        %s421 = sand.u32 %s33, 1
        %s422 = scalar_lea.sflag [#allocation6], %s421
        %s423 = sand.u32 %s81, 1
        %s424 = smul.addr %s423, 16
        %s425 = scalar_lea.vmem [#allocation5], %s424
        %p426 = pneg %p94
        %p427 = pneg %p91
        %s428 = sand.u32 %s33, 1
        %s429 = scalar_lea.sflag [#allocation6], %s428
        %s430 = sand.u32 %s107, 1
        %s431 = smul.addr %s430, 16
        %s432 = scalar_lea.vmem [#allocation7], %s431
        %p433 = pneg %p120
        %p434 = pneg %p117
        %s435 = sand.u32 %s33, 1
        %s436 = scalar_lea.sflag [#allocation9], %s435
        %s437 = sand.u32 %s135, 1
        %s438 = smul.addr %s437, 4
        %s439 = scalar_lea.vmem [#allocation8], %s438
        %p440 = pneg %p148
        %p441 = pneg %p145
        %s442 = sand.u32 %s33, 1
        %s443 = scalar_lea.sflag [#allocation9], %s442
        %s444 = sand.u32 %s163, 1
        %s445 = smul.addr %s444, 16
        %s446 = scalar_lea.vmem [#allocation10], %s445
        %p447 = pneg %p176
        %p448 = pneg %p173
        %p449 = pneg %p204
        %p450 = pneg %p201
        %s451 = sand.u32 %s191, 1
        %s452 = scalar_lea.sflag [#allocation4], %s451
        %s453 = sand.u32 %s191, 1
        %s454 = smul.addr %s453, 16
        %s455 = scalar_lea.vmem [#allocation11], %s454
        %p456 = pneg %p232
        %p457 = pneg %p229
        %s458 = sand.u32 %s219, 1
        %s459 = scalar_lea.sflag [#allocation13], %s458
        %s460 = sand.u32 %s219, 1
        %s461 = smul.addr %s460, 16
        %s462 = scalar_lea.vmem [#allocation12], %s461
        %s463 = smul.u32 2, %s38
        %s464 = smul.u32 2, %s38
        %s465 = smul.u32 2, %s38
        %s466 = smul.u32 2, %s38
        %s467 = smul.u32 2, %s38
        %v470 = vld [vmem:[%s373] sm:$0xff]
        %v471 = vld [vmem:[%s373 + $0x8] sm:$0xff]
        %v472 = vld [vmem:[%s382] sm:$0xff]
        %v473 = vld [vmem:[%s382 + $0x8] sm:$0xff]
        %v474 = vld [vmem:[%s391] sm:$0xff]
        %v475 = vld [vmem:[%s391 + $0x8] sm:$0xff]
        %vm476 = vcmask 261120
        %v478 = vsel %vm476, %v470, 0
        %v481 = vsel %vm476, %v471, 0
        %v484 = vsel %vm476, %v472, 0
        %v487 = vsel %vm476, %v473, 0
        %489 = vmatprep.subr.mxu0 0.0
        %490 = vmatpush1.xpose.msra.mxu0 0.0
        %491 = vmatprep.subr.mxu0 0.0
        %492 = vmatpush1.xpose.msra.mxu0 0.0
        %493 = vmatprep.subr.mxu0 0.0
        %494 = vmatpush1.xpose.msra.mxu0 0.0
        %495 = vmatprep.subr.mxu0 0.0
        %496 = vmatpush1.xpose.msra.mxu0 0.0
        %497 = vmatprep.subr.mxu0 0.0
        %498 = vmatpush1.xpose.msra.mxu0 0.0
        %499 = vmatprep.subr.mxu0 0.0
        %500 = vmatpush1.xpose.msra.mxu0 0.0
        %501 = vmatprep.subr.mxu0 0.0
        %502 = vmatpush1.xpose.msra.mxu0 0.0
        %503 = vmatprep.subr.mxu0 0.0
        %504 = vmatpush1.xpose.msra.mxu0 0.0
        %505 = vmatprep.subr.mxu0 0.0
        %506 = vmatpush1.xpose.msra.mxu0 0.0
        %507 = vmatprep.subr.mxu0 0.0
        %508 = vmatpush1.xpose.msra.mxu0 0.0
        %509 = vmatprep.subr.mxu0 0.0
        %510 = vmatpush1.xpose.msra.mxu0 0.0
        %511 = vmatprep.subr.mxu0 0.0
        %512 = vmatpush1.xpose.msra.mxu0 0.0
        %513 = vmatprep.subr.mxu0 0.0
        %514 = vmatpush1.xpose.msra.mxu0 0.0
        %515 = vmatprep.subr.mxu0 0.0
        %516 = vmatpush1.xpose.msra.mxu0 0.0
        %517 = vmatprep.subr.mxu0 0.0
        %518 = vmatpush1.xpose.msra.mxu0 %v487
        %519 = vmatprep.subr.mxu0 0.0
        %520 = vmatpush1.xpose.msra.mxu0 %v484
        %521 = vmatprep.subr.mxu0 0.0
        %522 = vmatpush2.xpose.msra.mxu0 0.0
        %523 = vmatprep.subr.mxu0 0.0
        %524 = vmatpush2.xpose.msra.mxu0 0.0
        %525 = vmatprep.subr.mxu0 0.0
        %526 = vmatpush2.xpose.msra.mxu0 0.0
        %527 = vmatprep.subr.mxu0 0.0
        %528 = vmatpush2.xpose.msra.mxu0 0.0
        %529 = vmatprep.subr.mxu0 0.0
        %530 = vmatpush2.xpose.msra.mxu0 0.0
        %531 = vmatprep.subr.mxu0 0.0
        %532 = vmatpush2.xpose.msra.mxu0 0.0
        %533 = vmatprep.subr.mxu0 0.0
        %534 = vmatpush2.xpose.msra.mxu0 0.0
        %535 = vmatprep.subr.mxu0 0.0
        %536 = vmatpush2.xpose.msra.mxu0 0.0
        %537 = vmatprep.subr.mxu0 0.0
        %538 = vmatpush2.xpose.msra.mxu0 0.0
        %539 = vmatprep.subr.mxu0 0.0
        %540 = vmatpush2.xpose.msra.mxu0 0.0
        %541 = vmatprep.subr.mxu0 0.0
        %542 = vmatpush2.xpose.msra.mxu0 0.0
        %543 = vmatprep.subr.mxu0 0.0
        %544 = vmatpush2.xpose.msra.mxu0 0.0
        %545 = vmatprep.subr.mxu0 0.0
        %546 = vmatpush2.xpose.msra.mxu0 0.0
        %547 = vmatprep.subr.mxu0 0.0
        %548 = vmatpush2.xpose.msra.mxu0 0.0
        %549 = vmatprep.subr.mxu0 0.0
        %550 = vmatpush2.xpose.msra.mxu0 0.0
        %551 = vmatprep.subr.mxu0 0.0
        %552 = vmatpush2.xpose.msra.mxu0 0.0
        %553 = vmatprep.mubr.f32.mxu0 0.0
        %554 = vmatmul.mubr.f32.gmra.mxu0 %v478
        %v555 = vpop.f32.mrf.mxu0
        %v556 = vadd.f32 0.0, %v555
        %v557 = vpop.f32.mrf.mxu0
        %558 = vmatprep.mubr.f32.mxu0 0.0
        %559 = vmatmul.mubr.f32.gmra.mxu0 %v481
        %v560 = vpop.f32.mrf.mxu0
        %v561 = vadd.f32 0.0, %v560
        %v562 = vpop.f32.mrf.mxu0
        %563 = vdwg.mxu0
        %v564 = vld [vmem:[%s409] sm:$0xff]
        %v565 = vld [vmem:[%s409 + $0x8] sm:$0xff]
        %v566 = vmul.f32 %v556, %v564
        %v567 = vmul.f32 %v561, %v565
        %v568 = vmul.f32 %v566, 0.17677669
        %v569 = vmul.f32 %v567, 0.17677669
        %v570 = vld [vmem:[%s400] sm:$0x3]
        %v571 = vld [vmem:[%s400 + $0x2] sm:$0x3]
        %vm572 = vnez %v570
        %vm573 = vnez %v571
        %v574 = vsel %vm572, 16843009, 0
        %v575 = vsel %vm573, 16843009, 0
        %v576 = vunpack.c.0.s8 %v574
        %v577 = vunpack.c.0.s8 %v575
        %vm578 = vcmp.ne.s32.totalorder %v576, 0
        %vm579 = vcmp.ne.s32.totalorder %v577, 0
        %v580 = vsel %vm578, -1e+30, %v568
        %v581 = vsel %vm579, -1e+30, %v569
        %vm582 = vcmask 130048
        %v583 = vsel %vm582, %v580, -inf
        %584 = vmax.xlane.f32.xlu0 %v583
        %v585 = vpop.xlane.xlu0 %584
        %v586 = vsel %vm582, %v581, -inf
        %587 = vmax.xlane.f32.xlu0 %v586
        %v588 = vpop.xlane.xlu0 %587
        %v589 = vsub.f32 %v580, %v585
        %v590 = vsub.f32 %v581, %v588
        %v591 = vmul.f32 %v589, 1.442695
        %v592 = vpow.pop %v591
        %v593 = vmul.f32 %v590, 1.442695
        %v594 = vpow.pop %v593
        %v595 = vsel %vm582, %v592, 0.0
        %596 = vadd.xlane.f32.xlu0 %v595
        %v597 = vpop.xlane.xlu0 %596
        %v598 = vsel %vm582, %v594, 0.0
        %599 = vadd.xlane.f32.xlu0 %v598
        %v600 = vpop.xlane.xlu0 %599
        %v601 = vrcp.pop %v597
        %v602 = vrcp.pop %v600
        %v603 = vmul.f32 %v592, %v601
        %v604 = vmul.f32 %v594, %v602
        %605 = vst.msk [vmem:[%s462] sm:$0xff] %vm582, %v603
        %606 = vst.msk [vmem:[%s462 + $0x8] sm:$0xff] %vm582, %v604
        %v608 = vsel %vm582, %v603, 0
        %v611 = vsel %vm582, %v604, 0
        %613 = vmatprep.subr.mxu0 0.0
        %614 = vmatpush1.msra.mxu0 0.0
        %615 = vmatprep.subr.mxu0 0.0
        %616 = vmatpush1.msra.mxu0 0.0
        %617 = vmatprep.subr.mxu0 0.0
        %618 = vmatpush1.msra.mxu0 0.0
        %619 = vmatprep.subr.mxu0 0.0
        %620 = vmatpush1.msra.mxu0 0.0
        %621 = vmatprep.subr.mxu0 0.0
        %622 = vmatpush1.msra.mxu0 0.0
        %623 = vmatprep.subr.mxu0 0.0
        %624 = vmatpush1.msra.mxu0 0.0
        %625 = vmatprep.subr.mxu0 0.0
        %626 = vmatpush1.msra.mxu0 0.0
        %627 = vmatprep.subr.mxu0 0.0
        %628 = vmatpush1.msra.mxu0 0.0
        %629 = vmatprep.subr.mxu0 0.0
        %630 = vmatpush1.msra.mxu0 0.0
        %631 = vmatprep.subr.mxu0 0.0
        %632 = vmatpush1.msra.mxu0 0.0
        %633 = vmatprep.subr.mxu0 0.0
        %634 = vmatpush1.msra.mxu0 0.0
        %635 = vmatprep.subr.mxu0 0.0
        %636 = vmatpush1.msra.mxu0 0.0
        %637 = vmatprep.subr.mxu0 0.0
        %638 = vmatpush1.msra.mxu0 0.0
        %639 = vmatprep.subr.mxu0 0.0
        %640 = vmatpush1.msra.mxu0 0.0
        %641 = vmatprep.subr.mxu0 0.0
        %642 = vmatpush1.msra.mxu0 %v475
        %643 = vmatprep.subr.mxu0 0.0
        %644 = vmatpush1.msra.mxu0 %v474
        %645 = vmatprep.subr.mxu0 0.0
        %646 = vmatpush2.msra.mxu0 0.0
        %647 = vmatprep.subr.mxu0 0.0
        %648 = vmatpush2.msra.mxu0 0.0
        %649 = vmatprep.subr.mxu0 0.0
        %650 = vmatpush2.msra.mxu0 0.0
        %651 = vmatprep.subr.mxu0 0.0
        %652 = vmatpush2.msra.mxu0 0.0
        %653 = vmatprep.subr.mxu0 0.0
        %654 = vmatpush2.msra.mxu0 0.0
        %655 = vmatprep.subr.mxu0 0.0
        %656 = vmatpush2.msra.mxu0 0.0
        %657 = vmatprep.subr.mxu0 0.0
        %658 = vmatpush2.msra.mxu0 0.0
        %659 = vmatprep.subr.mxu0 0.0
        %660 = vmatpush2.msra.mxu0 0.0
        %661 = vmatprep.subr.mxu0 0.0
        %662 = vmatpush2.msra.mxu0 0.0
        %663 = vmatprep.subr.mxu0 0.0
        %664 = vmatpush2.msra.mxu0 0.0
        %665 = vmatprep.subr.mxu0 0.0
        %666 = vmatpush2.msra.mxu0 0.0
        %667 = vmatprep.subr.mxu0 0.0
        %668 = vmatpush2.msra.mxu0 0.0
        %669 = vmatprep.subr.mxu0 0.0
        %670 = vmatpush2.msra.mxu0 0.0
        %671 = vmatprep.subr.mxu0 0.0
        %672 = vmatpush2.msra.mxu0 0.0
        %673 = vmatprep.subr.mxu0 0.0
        %674 = vmatpush2.msra.mxu0 0.0
        %675 = vmatprep.subr.mxu0 0.0
        %676 = vmatpush2.msra.mxu0 0.0
        %677 = vmatprep.mubr.f32.mxu0 0.0
        %678 = vmatmul.mubr.f32.gmra.mxu0 %v608
        %v679 = vpop.f32.mrf.mxu0
        %v680 = vadd.f32 0.0, %v679
        %v681 = vpop.f32.mrf.mxu0
        %682 = vmatprep.mubr.f32.mxu0 0.0
        %683 = vmatmul.mubr.f32.gmra.mxu0 %v611
        %v684 = vpop.f32.mrf.mxu0
        %v685 = vadd.f32 0.0, %v684
        %v686 = vpop.f32.mrf.mxu0
        %687 = vdwg.mxu0
        %688 = vst.msk [vmem:[%s455] sm:$0xff] %vm476, %v680
        %689 = vst.msk [vmem:[%s455 + $0x8] sm:$0xff] %vm476, %v685
        %s690 = sand.u32 %s191, 1
        %s691 = scalar_lea.sflag [#allocation4], %s690
        %s692 = sand.u32 %s191, 1
        %s693 = smul.addr %s692, 16
        %s694 = scalar_lea.vmem [#allocation11], %s693
        %s695 = sand.u32 %s219, 1
        %s696 = scalar_lea.sflag [#allocation13], %s695
        %s697 = sand.u32 %s219, 1
        %s698 = smul.addr %s697, 16
        %s699 = scalar_lea.vmem [#allocation12], %s698
        // Predicated region
        $region61: #{tpu_custom_call.1} parent=39 // pred_check
          %p700 = pneg %p201
        $region62: #{tpu_custom_call.1} parent=39 // pred_check_branch
          %702 = sbr.rel (%p700) target = $region64
        $region63: #{tpu_custom_call.1} parent=39 // pred_region
          %s703 = smul.u32 2, %s38
          %s705 = ssub.s32 256, 256
          %706 = vsyncadd %s691, %s705
          %s707 = smul.addr %s37, 2
          %s708 = sadd.s32 %s703, %s707
          %s709 = smul.addr %s708, 128
          %s710 = scalar_lea.hbm %s5, %s709
          %s711 = sshll.u32 %s694, 4
          %s712 = int_to_ptr.vmem [resolvable:$true] %s711
          %717 = dma.vmem_to_hbm [thread:$0]  %s712, 256, %s710, %s691, 128, 128, 8
        $region64: #{tpu_custom_call.1} parent=39 // pred_fallthru
          _
        // Predicated region
        $region65: #{tpu_custom_call.1} parent=39 // pred_check
          %p718 = pneg %p229
        $region66: #{tpu_custom_call.1} parent=39 // pred_check_branch
          %720 = sbr.rel (%p718) target = $region68
        $region67: #{tpu_custom_call.1} parent=39 // pred_region
          %s721 = smul.u32 2, %s38
          %s723 = ssub.s32 256, 256
          %724 = vsyncadd %s696, %s723
          %s725 = smul.addr %s37, 2
          %s726 = sadd.s32 %s721, %s725
          %s727 = smul.addr %s726, 128
          %s728 = scalar_lea.hbm %s6, %s727
          %s729 = sshll.u32 %s699, 4
          %s730 = int_to_ptr.vmem [resolvable:$true] %s729
          %735 = dma.vmem_to_hbm [thread:$0]  %s730, 256, %s728, %s696, 128, 128, 8
        $region68: #{tpu_custom_call.1} parent=39 // pred_fallthru
          _
      $region40: #{tpu_custom_call.1} parent=5 // pred_fallthru
        _
      %p736 = scmp.le.s32.totalorder 2, %s28
      // Predicated region
      $region69: #{tpu_custom_call.1} parent=5 // pred_check
        %p737 = pneg %p736
      $region70: #{tpu_custom_call.1} parent=5 // pred_check_branch
        %739 = sbr.rel (%p737) target = $region72
      $region71: #{tpu_custom_call.1} parent=5 // pred_region
        %s740 = ssub.s32 %s28, 2
        // Predicated region
        $region73: #{tpu_custom_call.1} parent=71 // pred_check
          %p741 = pneg %p207
        $region74: #{tpu_custom_call.1} parent=71 // pred_check_branch
          %743 = sbr.rel (%p741) target = $region76
        $region75: #{tpu_custom_call.1} parent=71 // pred_region
          %s744 = sand.u32 %s192, 1
          %s745 = scalar_lea.sflag [#allocation4], %s744
          %s746 = sand.u32 %s192, 1
          %s747 = smul.addr %s746, 16
          %s748 = scalar_lea.vmem [#allocation11], %s747
          %749 = dma.done %s745, 256
        $region76: #{tpu_custom_call.1} parent=71 // pred_fallthru
          _
        // Predicated region
        $region77: #{tpu_custom_call.1} parent=71 // pred_check
          %p750 = pneg %p235
        $region78: #{tpu_custom_call.1} parent=71 // pred_check_branch
          %752 = sbr.rel (%p750) target = $region80
        $region79: #{tpu_custom_call.1} parent=71 // pred_region
          %s753 = sand.u32 %s220, 1
          %s754 = scalar_lea.sflag [#allocation13], %s753
          %s755 = sand.u32 %s220, 1
          %s756 = smul.addr %s755, 16
          %s757 = scalar_lea.vmem [#allocation12], %s756
          %758 = dma.done %s754, 256
        $region80: #{tpu_custom_call.1} parent=71 // pred_fallthru
          _
      $region72: #{tpu_custom_call.1} parent=5 // pred_fallthru
        _
    $region6: #{tpu_custom_call.1} parent=1 // loop_footer
      %s32 = sadd.s32 1, %s28
    $region7: #{tpu_custom_call.1} parent=1 // loop_footer_branch
      %27 = sbr.rel target = $region3
    $region8: #{tpu_custom_call.1} parent=1 // loop_exit
      _
    %759 = vsyncpa [#allocation3], 1
    %s760 = scalar_lea.sflag [#allocation3], 1
    %761 = vsyncpa %s760, 1
    %762 = vsyncpa [#allocation6], 1
    %s763 = scalar_lea.sflag [#allocation6], 1
    %764 = vsyncpa %s763, 1
    %765 = vsyncpa [#allocation9], 1
    %s766 = scalar_lea.sflag [#allocation9], 1
    %767 = vsyncpa %s766, 1
    %768 = vsyncpa [#allocation4], 1
    %s769 = scalar_lea.sflag [#allocation4], 1
    %770 = vsyncpa %s769, 1
    %771 = vsyncpa [#allocation13], 1
    %s772 = scalar_lea.sflag [#allocation13], 1
    %773 = vsyncpa %s772, 1

</llo_original>
